<compile_context>
chip_gen: v7x
topology: tpu7x:2x2x1
jax: 0.10.0
libtpu: 0.0.40
codegen_flags: <defaults>
</compile_context>

<pallas_src>
import jax
import jax.numpy as jnp
from jax import lax
from jax.experimental import pallas as pl
from jax.experimental.pallas import tpu as pltpu


def _round_up(x, m):
    return (x + m - 1) // m * m


def gsr_kernel(w1_ref, w2_ref, u_ref, ft_ref, adj_ref, x_ref):
    hr = adj_ref.shape[-1]          # padded hr

    # a = W @ [I; I] == W[:, :lr] + W[:, lr:]                        (hr, lr)
    a = w1_ref[...] + w2_ref[...]
    u = jnp.abs(u_ref[0])           # U_lr = |eigvecs|               (lr, lr)
    ft = ft_ref[0]                  # X^T                            (hr, lr)

    # b^T = |U_lr| @ a^T   (trans_b MXU form; f32: cancellation-heavy step)
    bT = lax.dot_general(u, a, (((1,), (1,)), ((), ())),
                         preferred_element_type=jnp.float32)          # (lr, hr)

    # f_d^T = |X^T @ b^T| == |(b @ X)^T|   (canonical MXU form). bf16 operands,
    # f32 accumulation: native single-pass MXU on v5e, fewer vregs everywhere.
    fdT = jnp.abs(jnp.dot(ft.astype(jnp.bfloat16), bT.astype(jnp.bfloat16),
                          preferred_element_type=jnp.float32))         # (hr, hr)

    # fill_diagonal_(1); the mask is symmetric, so applying it to f_d^T is
    # identical to applying it to f_d.
    rows = lax.broadcasted_iota(jnp.int32, (hr, hr), 0)
    cols = lax.broadcasted_iota(jnp.int32, (hr, hr), 1)
    diag = rows == cols
    fdT = jnp.where(diag, 1.0, fdT)

    # normalize_adj_torch: r = rowsum(f_d)^(-1/2); adj[i,j] = r[i]*f_d[j,i]*r[j].
    # rowsum >= 1 (abs entries + unit diagonal placed before the reduction), so
    # rsqrt is always finite and the torch inf->0 guard is dead and omitted.
    deg_row = jnp.sum(fdT, axis=0, keepdims=True)       # (1, hr) rowsum of f_d
    r_row = lax.rsqrt(deg_row)                          # EUP rsqrt (f32)
    # (hr, 1) orientation of r without materializing an f32 identity and
    # without an N=1 MXU mat-vec (perf-review fix): diag-masked lane reduction
    # reusing the existing diag mask; cheap and hidden under the hr^3 matmul.
    r_col = jnp.sum(jnp.where(diag, jnp.broadcast_to(r_row, (hr, hr)), 0.0),
                    axis=1, keepdims=True)              # (hr, 1)
    adj = r_col * fdT * r_row
    adj_ref[0] = adj

    # X_hr = adj @ adj^T. dot_general with identical operands is exactly
    # symmetric (also with bf16 operands), so torch's 0.5*(X+X^T) is a no-op
    # and omitted; then diag = 1; abs.
    adj16 = adj.astype(jnp.bfloat16)
    xx = lax.dot_general(adj16, adj16, (((1,), (1,)), ((), ())),
                         preferred_element_type=jnp.float32)
    x_ref[0] = jnp.abs(jnp.where(diag, 1.0, xx))


@jax.jit
def gsr_layer_batched(A, X, weights):
    """Pallas forward of GSRLayer over a batch of graphs.

    A: (B, lr, lr) symmetric, X: (B, lr, hr), weights: (hr, hr) shared.
    Returns (adj, |X_hr|), each (B, hr, hr). One graph per grid step;
    the batch axis is "parallel" (sharded across TensorCores on v7x).
    """
    B, lr_dim, _ = A.shape
    hr_dim = weights.shape[0]
    assert X.shape == (B, lr_dim, hr_dim)
    assert hr_dim == 2 * lr_dim, "GSRLayer requires hr_dim == 2 * lr_dim"

    # TODO(synk): torch.linalg.eigh has no Pallas/Mosaic primitive; the
    # eigendecomposition is done with jnp.linalg.eigh inside the jitted
    # wrapper (UPLO='U' to match the torch reference).
    _, U_lr = jnp.linalg.eigh(A.astype(jnp.float32), UPLO="U",
                              symmetrize_input=False)

    w = weights.astype(jnp.float32)
    w1 = w[:, :lr_dim]                                   # W @ [I; I] == w1 + w2
    w2 = w[:, lr_dim:]
    ft = jnp.swapaxes(X.astype(jnp.float32), 1, 2)       # (B, hr, lr); keeps
                                                         # every matmul canonical

    # Zero-pad to lane-dense sizes (crop after the call). Zero padding is
    # exact: padded rows/cols of f_d are zero, padded diagonal entries are 1
    # with degree 1, and never leak into the valid block.
    hr_p = _round_up(hr_dim, 128)
    lr_p = _round_up(lr_dim, 128)
    dh, dl = hr_p - hr_dim, lr_p - lr_dim

    w1p = jnp.pad(w1, ((0, dh), (0, dl)))
    w2p = jnp.pad(w2, ((0, dh), (0, dl)))
    up = jnp.pad(U_lr, ((0, 0), (0, dl), (0, dl)))
    ftp = jnp.pad(ft, ((0, 0), (0, dh), (0, dl)))

    # Advisory cost hint for XLA's scheduler around the custom call.
    flops = 2 * B * (lr_p * lr_p * hr_p + hr_p * lr_p * hr_p + hr_p * hr_p * hr_p)
    bytes_accessed = 4 * (w1p.size + w2p.size + up.size + ftp.size
                          + 2 * B * hr_p * hr_p)
    cost = pl.CostEstimate(flops=flops, transcendentals=B * hr_p,
                           bytes_accessed=bytes_accessed)

    adj_p, x_p = pl.pallas_call(
        gsr_kernel,
        grid=(B,),
        in_specs=[
            pl.BlockSpec((hr_p, lr_p), lambda b: (0, 0)),        # W[:, :lr]
            pl.BlockSpec((hr_p, lr_p), lambda b: (0, 0)),        # W[:, lr:]
            pl.BlockSpec((1, lr_p, lr_p), lambda b: (b, 0, 0)),  # eigvecs
            pl.BlockSpec((1, hr_p, lr_p), lambda b: (b, 0, 0)),  # X^T
        ],
        out_specs=(
            pl.BlockSpec((1, hr_p, hr_p), lambda b: (b, 0, 0)),
            pl.BlockSpec((1, hr_p, hr_p), lambda b: (b, 0, 0)),
        ),
        out_shape=(
            jax.ShapeDtypeStruct((B, hr_p, hr_p), jnp.float32),
            jax.ShapeDtypeStruct((B, hr_p, hr_p), jnp.float32),
        ),
        compiler_params=pltpu.CompilerParams(
            dimension_semantics=("parallel",)),
        cost_estimate=cost,
    )(w1p, w2p, up, ftp)

    return adj_p[:, :hr_dim, :hr_dim], x_p[:, :hr_dim, :hr_dim]


@jax.jit
def gsr_layer(A, X, weights):
    """Single-graph GSRLayer forward (matches the torch module); returns (adj, |X_hr|)."""
    adj, x_hr = gsr_layer_batched(A[None], X[None], weights)
    return adj[0], x_hr[0]


def gsr_reference(A, X, weights):
    """Pure-JAX mirror of the torch GSRLayer.forward (for correctness check)."""
    lr_dim = A.shape[0]
    hr_dim = weights.shape[0]
    hi = lax.Precision.HIGHEST
    _, U_lr = jnp.linalg.eigh(A.astype(jnp.float32), UPLO="U",
                              symmetrize_input=False)
    U_lr = jnp.abs(U_lr)
    eye = jnp.eye(lr_dim, dtype=jnp.float32)
    s_d = jnp.concatenate([eye, eye], axis=0)
    a = jnp.matmul(weights.astype(jnp.float32), s_d, precision=hi)
    b = jnp.matmul(a, U_lr.T, precision=hi)
    f_d = jnp.abs(jnp.matmul(b, X.astype(jnp.float32), precision=hi))
    dmask = jnp.eye(hr_dim, dtype=bool)
    f_d = jnp.where(dmask, 1.0, f_d)
    rowsum = f_d.sum(axis=1)
    r = jnp.where(rowsum > 0, rowsum ** -0.5, 0.0)
    mx = f_d * r[None, :]          # f_d @ diag(r)
    adj = mx.T * r[None, :]        # transpose, then @ diag(r)
    Xo = jnp.matmul(adj, adj.T, precision=hi)
    Xo = 0.5 * (Xo + Xo.T)
    Xo = jnp.where(dmask, 1.0, Xo)
    return adj, jnp.abs(Xo)


if __name__ == "__main__":
    lr_dim, hr_dim = 16, 32
    batch = 3

    key = jax.random.PRNGKey(0)
    k_a, k_x, k_w = jax.random.split(key, 3)

    # Symmetric low-res adjacencies, features, Glorot-uniform (shared) weights.
    M = jax.random.normal(k_a, (batch, lr_dim, lr_dim), dtype=jnp.float32)
    A = 0.5 * (M + jnp.swapaxes(M, 1, 2))
    X = jax.random.normal(k_x, (batch, lr_dim, hr_dim), dtype=jnp.float32)
    init_range = (6.0 / (hr_dim + hr_dim)) ** 0.5
    weights = jax.random.uniform(k_w, (hr_dim, hr_dim), dtype=jnp.float32,
                                 minval=-init_range, maxval=init_range)

    # Single-graph path (torch-module signature) and batched path (grid=(B,)).
    adj0, x0 = gsr_layer(A[0], X[0], weights)
    adj_b, x_b = gsr_layer_batched(A, X, weights)
    jax.block_until_ready((adj0, x0, adj_b, x_b))

    assert adj0.shape == (hr_dim, hr_dim) and x0.shape == (hr_dim, hr_dim)
    assert adj_b.shape == (batch, hr_dim, hr_dim)
    assert x_b.shape == (batch, hr_dim, hr_dim)

    # Tolerances loose enough for bf16-operand MXU matmuls / rsqrt ulp deltas,
    # tight enough to catch any structural (transpose/normalization) bug.
    adj_r0, x_r0 = gsr_reference(A[0], X[0], weights)
    assert jnp.allclose(adj0, adj_r0, rtol=1e-2, atol=1e-3), "adj mismatch (single)"
    assert jnp.allclose(x0, x_r0, rtol=1e-2, atol=1e-3), "X_hr mismatch (single)"
    for b in range(batch):
        adj_rb, x_rb = gsr_reference(A[b], X[b], weights)
        assert jnp.allclose(adj_b[b], adj_rb, rtol=1e-2, atol=1e-3), f"adj mismatch (graph {b})"
        assert jnp.allclose(x_b[b], x_rb, rtol=1e-2, atol=1e-3), f"X_hr mismatch (graph {b})"

    print("KERNEL_OK")
</pallas_src>

<mosaic_0001>
module attributes {stable_mosaic.version = 11 : i64} {
  func.func @gsr_kernel(%arg0: i32, %arg1: memref<128x128xf32, #tpu.memory_space<vmem>>, %arg2: memref<128x128xf32, #tpu.memory_space<vmem>>, %arg3: memref<1x128x128xf32, #tpu.memory_space<vmem>>, %arg4: memref<1x128x128xf32, #tpu.memory_space<vmem>>, %arg5: memref<1x128x128xf32, #tpu.memory_space<vmem>>, %arg6: memref<1x128x128xf32, #tpu.memory_space<vmem>>) attributes {dimension_semantics = [#tpu.dimension_semantics<parallel>], iteration_bounds = array<i64: 1>, scalar_prefetch = 0 : i64, scratch_operands = 0 : i64, tpu.core_type = #tpu.core_type<tc>, window_params = [{pipeline_mode = #tpu.pipeline_mode<synchronous>, transform_indices = @transform_0, window_bounds = array<i64: 128, 128>}, {pipeline_mode = #tpu.pipeline_mode<synchronous>, transform_indices = @transform_1, window_bounds = array<i64: 128, 128>}, {transform_indices = @transform_2, window_bounds = array<i64: 1, 128, 128>}, {transform_indices = @transform_3, window_bounds = array<i64: 1, 128, 128>}, {transform_indices = @transform_4, window_bounds = array<i64: 1, 128, 128>}, {transform_indices = @transform_5, window_bounds = array<i64: 1, 128, 128>}]} {
    %c0 = arith.constant 0 : index
    %c0_0 = arith.constant 0 : index
    %0 = vector.load %arg1[%c0, %c0_0] : memref<128x128xf32, #tpu.memory_space<vmem>>, vector<128x128xf32>
    %c0_1 = arith.constant 0 : index
    %c0_2 = arith.constant 0 : index
    %1 = vector.load %arg2[%c0_1, %c0_2] : memref<128x128xf32, #tpu.memory_space<vmem>>, vector<128x128xf32>
    %2 = arith.addf %0, %1 : vector<128x128xf32>
    %c0_3 = arith.constant 0 : index
    %c0_4 = arith.constant 0 : index
    %c0_5 = arith.constant 0 : index
    %3 = vector.load %arg3[%c0_3, %c0_4, %c0_5] : memref<1x128x128xf32, #tpu.memory_space<vmem>>, vector<1x128x128xf32>
    %4 = vector.shape_cast %3 : vector<1x128x128xf32> to vector<128x128xf32>
    %5 = math.absf %4 : vector<128x128xf32>
    %c0_6 = arith.constant 0 : index
    %c0_7 = arith.constant 0 : index
    %c0_8 = arith.constant 0 : index
    %6 = vector.load %arg4[%c0_6, %c0_7, %c0_8] : memref<1x128x128xf32, #tpu.memory_space<vmem>>, vector<1x128x128xf32>
    %7 = vector.shape_cast %6 : vector<1x128x128xf32> to vector<128x128xf32>
    %cst = arith.constant dense<0.000000e+00> : vector<128x128xf32>
    %8 = tpu.matmul %5, %2, %cst {dimension_numbers = #tpu.dot_dimension_numbers<[1], [1], [0], [0], [0, 0, 1, 0], [], []>} : vector<128x128xf32>, vector<128x128xf32>, vector<128x128xf32> -> vector<128x128xf32>
    %9 = arith.truncf %7 : vector<128x128xf32> to vector<128x128xbf16>
    %10 = arith.truncf %8 : vector<128x128xf32> to vector<128x128xbf16>
    %cst_9 = arith.constant dense<0.000000e+00> : vector<128x128xf32>
    %11 = tpu.matmul %9, %10, %cst_9 {dimension_numbers = #tpu.dot_dimension_numbers<[1], [0], [0], [1], [0, 0, 1, 1], [], []>} : vector<128x128xbf16>, vector<128x128xbf16>, vector<128x128xf32> -> vector<128x128xf32>
    %12 = math.absf %11 : vector<128x128xf32>
    %13 = tpu.iota {dimensions = array<i32: 0>} : vector<128x128xi32>
    %14 = tpu.iota {dimensions = array<i32: 1>} : vector<128x128xi32>
    %15 = arith.cmpi eq, %13, %14 : vector<128x128xi32>
    %cst_10 = arith.constant 1.000000e+00 : f32
    %16 = vector.broadcast %cst_10 : f32 to vector<128x128xf32>
    %17 = arith.select %15, %16, %12 : vector<128x128xi1>, vector<128x128xf32>
    %cst_11 = arith.constant dense<0.000000e+00> : vector<128xf32>
    %18 = vector.multi_reduction <add>, %17, %cst_11 [0] : vector<128x128xf32> to vector<128xf32>
    %19 = vector.shape_cast %18 : vector<128xf32> to vector<1x128xf32>
    %20 = math.rsqrt %19 : vector<1x128xf32>
    %21 = vector.shape_cast %20 : vector<1x128xf32> to vector<1x128xf32>
    %22 = vector.broadcast %21 : vector<1x128xf32> to vector<128x128xf32>
    %cst_12 = arith.constant 0.000000e+00 : f32
    %23 = vector.broadcast %cst_12 : f32 to vector<128x128xf32>
    %24 = arith.select %15, %22, %23 : vector<128x128xi1>, vector<128x128xf32>
    %cst_13 = arith.constant dense<0.000000e+00> : vector<128xf32>
    %25 = vector.multi_reduction <add>, %24, %cst_13 [1] : vector<128x128xf32> to vector<128xf32>
    %26 = vector.shape_cast %25 : vector<128xf32> to vector<128x1xf32>
    %27 = vector.broadcast %26 : vector<128x1xf32> to vector<128x128xf32>
    %28 = arith.mulf %27, %17 : vector<128x128xf32>
    %29 = vector.broadcast %20 : vector<1x128xf32> to vector<128x128xf32>
    %30 = arith.mulf %28, %29 : vector<128x128xf32>
    %c0_14 = arith.constant 0 : index
    %c0_15 = arith.constant 0 : index
    %c0_16 = arith.constant 0 : index
    %31 = vector.load %arg5[%c0_14, %c0_15, %c0_16] : memref<1x128x128xf32, #tpu.memory_space<vmem>>, vector<1x128x128xf32>
    %32 = vector.shape_cast %31 : vector<1x128x128xf32> to vector<128x128xf32>
    %33 = vector.shape_cast %30 : vector<128x128xf32> to vector<1x128x128xf32>
    tpu.vector_store %arg5[%c0_14, %c0_15, %c0_16], %33 {strides = array<i32>} : memref<1x128x128xf32, #tpu.memory_space<vmem>>, vector<1x128x128xf32>,
    %34 = arith.truncf %30 : vector<128x128xf32> to vector<128x128xbf16>
    %cst_17 = arith.constant dense<0.000000e+00> : vector<128x128xf32>
    %35 = tpu.matmul %34, %34, %cst_17 {dimension_numbers = #tpu.dot_dimension_numbers<[1], [1], [0], [0], [0, 0, 1, 0], [], []>} : vector<128x128xbf16>, vector<128x128xbf16>, vector<128x128xf32> -> vector<128x128xf32>
    %cst_18 = arith.constant 1.000000e+00 : f32
    %36 = vector.broadcast %cst_18 : f32 to vector<128x128xf32>
    %37 = arith.select %15, %36, %35 : vector<128x128xi1>, vector<128x128xf32>
    %38 = math.absf %37 : vector<128x128xf32>
    %c0_19 = arith.constant 0 : index
    %c0_20 = arith.constant 0 : index
    %c0_21 = arith.constant 0 : index
    %39 = vector.load %arg6[%c0_19, %c0_20, %c0_21] : memref<1x128x128xf32, #tpu.memory_space<vmem>>, vector<1x128x128xf32>
    %40 = vector.shape_cast %39 : vector<1x128x128xf32> to vector<128x128xf32>
    %41 = vector.shape_cast %38 : vector<128x128xf32> to vector<1x128x128xf32>
    tpu.vector_store %arg6[%c0_19, %c0_20, %c0_21], %41 {strides = array<i32>} : memref<1x128x128xf32, #tpu.memory_space<vmem>>, vector<1x128x128xf32>,
    return
  }
  func.func @transform_0(%arg0: i32) -> (i32, i32) {
    %c0_i32 = arith.constant 0 : i32
    %c0_i32_0 = arith.constant 0 : i32
    %c0_i32_1 = arith.constant 0 : i32
    return %c0_i32, %c0_i32_0 : i32, i32
  }
  func.func @transform_1(%arg0: i32) -> (i32, i32) {
    %c0_i32 = arith.constant 0 : i32
    %c0_i32_0 = arith.constant 0 : i32
    %c0_i32_1 = arith.constant 0 : i32
    return %c0_i32, %c0_i32_0 : i32, i32
  }
  func.func @transform_2(%arg0: i32) -> (i32, i32, i32) {
    %c0_i32 = arith.constant 0 : i32
    %c0_i32_0 = arith.constant 0 : i32
    %c0_i32_1 = arith.constant 0 : i32
    return %arg0, %c0_i32, %c0_i32_0 : i32, i32, i32
  }
  func.func @transform_3(%arg0: i32) -> (i32, i32, i32) {
    %c0_i32 = arith.constant 0 : i32
    %c0_i32_0 = arith.constant 0 : i32
    %c0_i32_1 = arith.constant 0 : i32
    return %arg0, %c0_i32, %c0_i32_0 : i32, i32, i32
  }
  func.func @transform_4(%arg0: i32) -> (i32, i32, i32) {
    %c0_i32 = arith.constant 0 : i32
    %c0_i32_0 = arith.constant 0 : i32
    %c0_i32_1 = arith.constant 0 : i32
    return %arg0, %c0_i32, %c0_i32_0 : i32, i32, i32
  }
  func.func @transform_5(%arg0: i32) -> (i32, i32, i32) {
    %c0_i32 = arith.constant 0 : i32
    %c0_i32_0 = arith.constant 0 : i32
    %c0_i32_1 = arith.constant 0 : i32
    return %arg0, %c0_i32, %c0_i32_0 : i32, i32, i32
  }
}

</mosaic_0001>

<llo_original>
// kernel: custom-call.2
$region0: #{custom-call.2}
  %s0 = inlined_call_operand.vmem [shape: f32[1,8,8], index: 0, kind: input, shape index: {}]
  %s1 = inlined_call_operand.vmem [shape: f32[1,8,8], index: 1, kind: input, shape index: {}]
  %s2 = inlined_call_operand.vmem [shape: f32[1,8,8], index: 2, kind: input, shape index: {}]
  %s3 = inlined_call_operand.vmem [shape: f32[1,8,8], index: 3, kind: input, shape index: {}]
  %s4 = inlined_call_operand.vmem [shape: f32[1,8], index: 4, kind: output, shape index: {0}]
  %s5 = inlined_call_operand.vmem [shape: f32[1,8], index: 5, kind: output, shape index: {1}]
  %s6 = inlined_call_operand.vmem [shape: f32[1,8,8], index: 6, kind: output, shape index: {2}]
  %s7 = inlined_call_operand.vmem [shape: f32[1,8,8], index: 7, kind: output, shape index: {3}]
  %s8 = inlined_call_operand.vmem [shape: f32[1,8,8], index: 8, kind: output, shape index: {4}]
  %s9 = inlined_call_operand.vmem [shape: f32[1,8,8], index: 9, kind: output, shape index: {5}]
  %10 = xla_tuple %s4, %s5, %s6, %s7, %s8, %s9
  $region1: #{custom-call.2} parent=0
    #allocation0 [shape = 'u8[4096]{0}', space=vmem, size = 0x1000, scoped, tag = 'operand span for operand 0']
    #allocation1 [shape = 'u8[4096]{0}', space=vmem, size = 0x1000, scoped, tag = 'operand span for operand 1']
    #allocation2 [shape = 'u8[4096]{0}', space=vmem, size = 0x1000, scoped, tag = 'operand span for operand 2']
    #allocation3 [shape = 'u8[4096]{0}', space=vmem, size = 0x1000, scoped, tag = 'operand span for operand 3']
    #allocation4 [shape = 'u8[4096]{0}', space=vmem, size = 0x1000, scoped, tag = 'operand span for operand 4']
    #allocation5 [shape = 'u8[512]{0}', space=vmem, size = 0x400, scoped, tag = 'packed  for operand 4']
    #allocation6 [shape = 'u8[4096]{0}', space=vmem, size = 0x1000, scoped, tag = 'operand span for operand 5']
    #allocation7 [shape = 'u8[512]{0}', space=vmem, size = 0x400, scoped, tag = 'packed  for operand 5']
    #allocation8 [shape = 'u8[4096]{0}', space=vmem, size = 0x1000, scoped, tag = 'operand span for operand 6']
    #allocation9 [shape = 'u8[4096]{0}', space=vmem, size = 0x1000, scoped, tag = 'operand span for operand 7']
    #allocation10 [shape = 'u8[4096]{0}', space=vmem, size = 0x1000, scoped, tag = 'operand span for operand 8']
    #allocation11 [shape = 'u8[4096]{0}', space=vmem, size = 0x1000, scoped, tag = 'operand span for operand 9']
    #allocation12 [shape = 'f32[8,8]{1,0}', space=vmem, size = 0x1000, scoped, tag = 'a top-left matrix']
    #allocation13 [shape = 'f32[8,8]{1,0}', space=vmem, size = 0x1000, scoped, tag = 'a top-right matrix']
    #allocation14 [shape = 'f32[8,8]{1,0}', space=vmem, size = 0x1000, scoped, tag = 'a bottom-left matrix']
    #allocation15 [shape = 'f32[8,8]{1,0}', space=vmem, size = 0x1000, scoped, tag = 'a bottom-right matrix']
    // Predicated region
    $region2: #{custom-call.2} parent=1 // pred_check
      _
    $region3: #{custom-call.2} parent=1 // pred_check_branch
      %12 = sbr.rel (0) target = $region5
    $region4: #{custom-call.2} parent=1 // pred_region
      // Predicated region
      $region6: #{custom-call.2} parent=4 // pred_check
        _
      $region7: #{custom-call.2} parent=4 // pred_check_branch
        %14 = sbr.rel (0) target = $region9
      $region8: #{custom-call.2} parent=4 // pred_region
        // Predicated region
        $region21: #{custom-call.2} parent=8 // pred_check
          _
        $region22: #{custom-call.2} parent=8 // pred_check_branch
          %29 = sbr.rel (0) target = $region24
        $region23: #{custom-call.2} parent=8 // pred_region
          loop: start=0, step=1, limit=1
          $region25: #{custom-call.2} parent=23 // loop_pre_header
            _
          $region26: #{custom-call.2} parent=23 // loop_header
            %s31 = sphi 0, %s35
            %p32 = scmp.ge.s32.totalorder %s31, 1
            %s36 = sphi %s0, %s0
            %s37 = sphi [#allocation0], [#allocation0]
          $region27: #{custom-call.2} parent=23 // loop_header_branch
            %34 = sbr.rel (%p32) target = $region31
          $region28: #{custom-call.2} parent=23 // loop_body
            %v38 = vld [vmem:[%s36] sm:$0xff]
            %39 = vst [vmem:[%s37] sm:$0xff] %v38
          $region29: #{custom-call.2} parent=23 // loop_footer
            %s35 = sadd.s32 1, %s31
          $region30: #{custom-call.2} parent=23 // loop_footer_branch
            %30 = sbr.rel target = $region26
          $region31: #{custom-call.2} parent=23 // loop_exit
            _
        $region24: #{custom-call.2} parent=8 // pred_fallthru
          _
        // Predicated region
        $region32: #{custom-call.2} parent=8 // pred_check
          _
        $region33: #{custom-call.2} parent=8 // pred_check_branch
          %41 = sbr.rel target = $region35
        $region34: #{custom-call.2} parent=8 // pred_region
          _
        $region35: #{custom-call.2} parent=8 // pred_fallthru
          _
      $region9: #{custom-call.2} parent=4 // pred_fallthru
        _
      // Predicated region
      $region10: #{custom-call.2} parent=4 // pred_check
        _
      $region11: #{custom-call.2} parent=4 // pred_check_branch
        %16 = sbr.rel target = $region13
      $region12: #{custom-call.2} parent=4 // pred_region
        loop: start=0, step=1, limit=1
        $region14: #{custom-call.2} parent=12 // loop_pre_header
          _
        $region15: #{custom-call.2} parent=12 // loop_header
          %s19 = sphi 0, %s23
          %p20 = scmp.ge.s32.totalorder %s19, 1
          %s24 = sphi %s0, %s0
          %s25 = sphi [#allocation0], [#allocation0]
        $region16: #{custom-call.2} parent=12 // loop_header_branch
          %22 = sbr.rel (%p20) target = $region20
        $region17: #{custom-call.2} parent=12 // loop_body
          %v26 = vld [vmem:[%s24] sm:$0xff]
          %27 = vst [vmem:[%s25] sm:$0xff] %v26
        $region18: #{custom-call.2} parent=12 // loop_footer
          %s23 = sadd.s32 1, %s19
        $region19: #{custom-call.2} parent=12 // loop_footer_branch
          %18 = sbr.rel target = $region15
        $region20: #{custom-call.2} parent=12 // loop_exit
          _
      $region13: #{custom-call.2} parent=4 // pred_fallthru
        _
    $region5: #{custom-call.2} parent=1 // pred_fallthru
      _
    %42 = vnop
    // Predicated region
    $region36: #{custom-call.2} parent=1 // pred_check
      _
    $region37: #{custom-call.2} parent=1 // pred_check_branch
      %44 = sbr.rel (0) target = $region39
    $region38: #{custom-call.2} parent=1 // pred_region
      // Predicated region
      $region40: #{custom-call.2} parent=38 // pred_check
        _
      $region41: #{custom-call.2} parent=38 // pred_check_branch
        %46 = sbr.rel (0) target = $region43
      $region42: #{custom-call.2} parent=38 // pred_region
        // Predicated region
        $region55: #{custom-call.2} parent=42 // pred_check
          _
        $region56: #{custom-call.2} parent=42 // pred_check_branch
          %61 = sbr.rel (0) target = $region58
        $region57: #{custom-call.2} parent=42 // pred_region
          loop: start=0, step=1, limit=1
          $region59: #{custom-call.2} parent=57 // loop_pre_header
            _
          $region60: #{custom-call.2} parent=57 // loop_header
            %s63 = sphi 0, %s67
            %p64 = scmp.ge.s32.totalorder %s63, 1
            %s68 = sphi %s1, %s1
            %s69 = sphi [#allocation1], [#allocation1]
          $region61: #{custom-call.2} parent=57 // loop_header_branch
            %66 = sbr.rel (%p64) target = $region65
          $region62: #{custom-call.2} parent=57 // loop_body
            %v70 = vld [vmem:[%s68] sm:$0xff]
            %71 = vst [vmem:[%s69] sm:$0xff] %v70
          $region63: #{custom-call.2} parent=57 // loop_footer
            %s67 = sadd.s32 1, %s63
          $region64: #{custom-call.2} parent=57 // loop_footer_branch
            %62 = sbr.rel target = $region60
          $region65: #{custom-call.2} parent=57 // loop_exit
            _
        $region58: #{custom-call.2} parent=42 // pred_fallthru
          _
        // Predicated region
        $region66: #{custom-call.2} parent=42 // pred_check
          _
        $region67: #{custom-call.2} parent=42 // pred_check_branch
          %73 = sbr.rel target = $region69
        $region68: #{custom-call.2} parent=42 // pred_region
          _
        $region69: #{custom-call.2} parent=42 // pred_fallthru
          _
      $region43: #{custom-call.2} parent=38 // pred_fallthru
        _
      // Predicated region
      $region44: #{custom-call.2} parent=38 // pred_check
        _
      $region45: #{custom-call.2} parent=38 // pred_check_branch
        %48 = sbr.rel target = $region47
      $region46: #{custom-call.2} parent=38 // pred_region
        loop: start=0, step=1, limit=1
        $region48: #{custom-call.2} parent=46 // loop_pre_header
          _
        $region49: #{custom-call.2} parent=46 // loop_header
          %s51 = sphi 0, %s55
          %p52 = scmp.ge.s32.totalorder %s51, 1
          %s56 = sphi %s1, %s1
          %s57 = sphi [#allocation1], [#allocation1]
        $region50: #{custom-call.2} parent=46 // loop_header_branch
          %54 = sbr.rel (%p52) target = $region54
        $region51: #{custom-call.2} parent=46 // loop_body
          %v58 = vld [vmem:[%s56] sm:$0xff]
          %59 = vst [vmem:[%s57] sm:$0xff] %v58
        $region52: #{custom-call.2} parent=46 // loop_footer
          %s55 = sadd.s32 1, %s51
        $region53: #{custom-call.2} parent=46 // loop_footer_branch
          %50 = sbr.rel target = $region49
        $region54: #{custom-call.2} parent=46 // loop_exit
          _
      $region47: #{custom-call.2} parent=38 // pred_fallthru
        _
    $region39: #{custom-call.2} parent=1 // pred_fallthru
      _
    %74 = vnop
    // Predicated region
    $region70: #{custom-call.2} parent=1 // pred_check
      _
    $region71: #{custom-call.2} parent=1 // pred_check_branch
      %76 = sbr.rel (0) target = $region73
    $region72: #{custom-call.2} parent=1 // pred_region
      // Predicated region
      $region74: #{custom-call.2} parent=72 // pred_check
        _
      $region75: #{custom-call.2} parent=72 // pred_check_branch
        %78 = sbr.rel (0) target = $region77
      $region76: #{custom-call.2} parent=72 // pred_region
        // Predicated region
        $region89: #{custom-call.2} parent=76 // pred_check
          _
        $region90: #{custom-call.2} parent=76 // pred_check_branch
          %93 = sbr.rel (0) target = $region92
        $region91: #{custom-call.2} parent=76 // pred_region
          loop: start=0, step=1, limit=1
          $region93: #{custom-call.2} parent=91 // loop_pre_header
            _
          $region94: #{custom-call.2} parent=91 // loop_header
            %s95 = sphi 0, %s99
            %p96 = scmp.ge.s32.totalorder %s95, 1
            %s100 = sphi %s2, %s2
            %s101 = sphi [#allocation2], [#allocation2]
          $region95: #{custom-call.2} parent=91 // loop_header_branch
            %98 = sbr.rel (%p96) target = $region99
          $region96: #{custom-call.2} parent=91 // loop_body
            %v102 = vld [vmem:[%s100] sm:$0xff]
            %103 = vst [vmem:[%s101] sm:$0xff] %v102
          $region97: #{custom-call.2} parent=91 // loop_footer
            %s99 = sadd.s32 1, %s95
          $region98: #{custom-call.2} parent=91 // loop_footer_branch
            %94 = sbr.rel target = $region94
          $region99: #{custom-call.2} parent=91 // loop_exit
            _
        $region92: #{custom-call.2} parent=76 // pred_fallthru
          _
        // Predicated region
        $region100: #{custom-call.2} parent=76 // pred_check
          _
        $region101: #{custom-call.2} parent=76 // pred_check_branch
          %105 = sbr.rel target = $region103
        $region102: #{custom-call.2} parent=76 // pred_region
          _
        $region103: #{custom-call.2} parent=76 // pred_fallthru
          _
      $region77: #{custom-call.2} parent=72 // pred_fallthru
        _
      // Predicated region
      $region78: #{custom-call.2} parent=72 // pred_check
        _
      $region79: #{custom-call.2} parent=72 // pred_check_branch
        %80 = sbr.rel target = $region81
      $region80: #{custom-call.2} parent=72 // pred_region
        loop: start=0, step=1, limit=1
        $region82: #{custom-call.2} parent=80 // loop_pre_header
          _
        $region83: #{custom-call.2} parent=80 // loop_header
          %s83 = sphi 0, %s87
          %p84 = scmp.ge.s32.totalorder %s83, 1
          %s88 = sphi %s2, %s2
          %s89 = sphi [#allocation2], [#allocation2]
        $region84: #{custom-call.2} parent=80 // loop_header_branch
          %86 = sbr.rel (%p84) target = $region88
        $region85: #{custom-call.2} parent=80 // loop_body
          %v90 = vld [vmem:[%s88] sm:$0xff]
          %91 = vst [vmem:[%s89] sm:$0xff] %v90
        $region86: #{custom-call.2} parent=80 // loop_footer
          %s87 = sadd.s32 1, %s83
        $region87: #{custom-call.2} parent=80 // loop_footer_branch
          %82 = sbr.rel target = $region83
        $region88: #{custom-call.2} parent=80 // loop_exit
          _
      $region81: #{custom-call.2} parent=72 // pred_fallthru
        _
    $region73: #{custom-call.2} parent=1 // pred_fallthru
      _
    %106 = vnop
    // Predicated region
    $region104: #{custom-call.2} parent=1 // pred_check
      _
    $region105: #{custom-call.2} parent=1 // pred_check_branch
      %108 = sbr.rel (0) target = $region107
    $region106: #{custom-call.2} parent=1 // pred_region
      // Predicated region
      $region108: #{custom-call.2} parent=106 // pred_check
        _
      $region109: #{custom-call.2} parent=106 // pred_check_branch
        %110 = sbr.rel (0) target = $region111
      $region110: #{custom-call.2} parent=106 // pred_region
        // Predicated region
        $region123: #{custom-call.2} parent=110 // pred_check
          _
        $region124: #{custom-call.2} parent=110 // pred_check_branch
          %125 = sbr.rel (0) target = $region126
        $region125: #{custom-call.2} parent=110 // pred_region
          loop: start=0, step=1, limit=1
          $region127: #{custom-call.2} parent=125 // loop_pre_header
            _
          $region128: #{custom-call.2} parent=125 // loop_header
            %s127 = sphi 0, %s131
            %p128 = scmp.ge.s32.totalorder %s127, 1
            %s132 = sphi %s3, %s3
            %s133 = sphi [#allocation3], [#allocation3]
          $region129: #{custom-call.2} parent=125 // loop_header_branch
            %130 = sbr.rel (%p128) target = $region133
          $region130: #{custom-call.2} parent=125 // loop_body
            %v134 = vld [vmem:[%s132] sm:$0xff]
            %135 = vst [vmem:[%s133] sm:$0xff] %v134
          $region131: #{custom-call.2} parent=125 // loop_footer
            %s131 = sadd.s32 1, %s127
          $region132: #{custom-call.2} parent=125 // loop_footer_branch
            %126 = sbr.rel target = $region128
          $region133: #{custom-call.2} parent=125 // loop_exit
            _
        $region126: #{custom-call.2} parent=110 // pred_fallthru
          _
        // Predicated region
        $region134: #{custom-call.2} parent=110 // pred_check
          _
        $region135: #{custom-call.2} parent=110 // pred_check_branch
          %137 = sbr.rel target = $region137
        $region136: #{custom-call.2} parent=110 // pred_region
          _
        $region137: #{custom-call.2} parent=110 // pred_fallthru
          _
      $region111: #{custom-call.2} parent=106 // pred_fallthru
        _
      // Predicated region
      $region112: #{custom-call.2} parent=106 // pred_check
        _
      $region113: #{custom-call.2} parent=106 // pred_check_branch
        %112 = sbr.rel target = $region115
      $region114: #{custom-call.2} parent=106 // pred_region
        loop: start=0, step=1, limit=1
        $region116: #{custom-call.2} parent=114 // loop_pre_header
          _
        $region117: #{custom-call.2} parent=114 // loop_header
          %s115 = sphi 0, %s119
          %p116 = scmp.ge.s32.totalorder %s115, 1
          %s120 = sphi %s3, %s3
          %s121 = sphi [#allocation3], [#allocation3]
        $region118: #{custom-call.2} parent=114 // loop_header_branch
          %118 = sbr.rel (%p116) target = $region122
        $region119: #{custom-call.2} parent=114 // loop_body
          %v122 = vld [vmem:[%s120] sm:$0xff]
          %123 = vst [vmem:[%s121] sm:$0xff] %v122
        $region120: #{custom-call.2} parent=114 // loop_footer
          %s119 = sadd.s32 1, %s115
        $region121: #{custom-call.2} parent=114 // loop_footer_branch
          %114 = sbr.rel target = $region117
        $region122: #{custom-call.2} parent=114 // loop_exit
          _
      $region115: #{custom-call.2} parent=106 // pred_fallthru
        _
    $region107: #{custom-call.2} parent=1 // pred_fallthru
      _
    %138 = vnop
    %s139 = smov [#allocation12]
    %v140 = vld [vmem:[#allocation0] sm:$0xff]
    %141 = vst [vmem:[%s139] sm:$0xff] %v140
    %s142 = smov [#allocation13]
    %v143 = vld [vmem:[#allocation1] sm:$0xff]
    %144 = vst [vmem:[%s142] sm:$0xff] %v143
    %s145 = smov [#allocation14]
    %v146 = vld [vmem:[#allocation2] sm:$0xff]
    %147 = vst [vmem:[%s145] sm:$0xff] %v146
    %s148 = smov [#allocation15]
    %v149 = vld [vmem:[#allocation3] sm:$0xff]
    %150 = vst [vmem:[%s148] sm:$0xff] %v149
    %151 = vst [vmem:[#allocation8] sm:$0xff] 0.0
    %152 = vst [vmem:[#allocation9] sm:$0xff] 0.0
    %153 = vst [vmem:[#allocation10] sm:$0xff] 0.0
    %154 = vst [vmem:[#allocation11] sm:$0xff] 0.0
    %s155 = smov [#allocation8]
    %v156 = vlaneseq
    %v157 = vand.u32 %v156, 127
    %v158 = vmov %v157
    %v159 = vlaneseq
    %v160 = vshrl.u32 %v159, 7
    %v161 = vmov %v160
    %v162 = vld [vmem:[%s155] sm:$0xff]
    %vm165 = vcmp.eq.s32.totalorder %v161, %v158
    %v166 = vsel %vm165, 1.0, %v162
    %167 = vst [vmem:[%s155] sm:$0xff] %v166
    %s168 = smov [#allocation11]
    %v169 = vlaneseq
    %v170 = vand.u32 %v169, 127
    %v171 = vmov %v170
    %v172 = vlaneseq
    %v173 = vshrl.u32 %v172, 7
    %v174 = vmov %v173
    %v175 = vld [vmem:[%s168] sm:$0xff]
    %vm178 = vcmp.eq.s32.totalorder %v174, %v171
    %v179 = vsel %vm178, 1.0, %v175
    %180 = vst [vmem:[%s168] sm:$0xff] %v179
    // While loop
    $region138: #{custom-call.2} parent=1 // loop_pre_header
      _
    $region139: #{custom-call.2} parent=1 // loop_header
      %s182 = sphi 0, %s724
      %v183 = vlaneseq
      %v184 = vand.u32 %v183, 127
      %v185 = vmov %v184
      %v186 = vlaneseq
      %v187 = vshrl.u32 %v186, 7
      %v188 = vmov %v187
      %s189 = smov [#allocation12]
      %v190 = vlaneseq
      %v191 = vand.u32 %v190, 127
      %vm192 = vcmp.ge.s32.totalorder %v191, 0
      %vm193 = vcmp.lt.s32.totalorder %v191, 8
      %vm194 = vmand %vm192, %vm193
      %v195 = vld [vmem:[%s189] sm:$0xff]
      %v196 = vsel %vm194, %v195, 0.0
      %v197 = vmul.f32 %v196, %v196
      %vm200 = vcmp.eq.s32.totalorder %v188, %v185
      %v201 = vsel %vm200, 0.0, %v197
      %v202 = vlaneseq
      %v203 = vand.u32 %v202, 127
      %v204 = vmov %v203
      %v205 = vlaneseq
      %v206 = vshrl.u32 %v205, 7
      %v207 = vmov %v206
      %s208 = smov [#allocation13]
      %v209 = vlaneseq
      %v210 = vand.u32 %v209, 127
      %vm211 = vcmp.ge.s32.totalorder %v210, 0
      %vm212 = vcmp.lt.s32.totalorder %v210, 8
      %vm213 = vmand %vm211, %vm212
      %v214 = vld [vmem:[%s208] sm:$0xff]
      %v215 = vsel %vm213, %v214, 0.0
      %v216 = vmul.f32 %v215, %v215
      %v217 = vadd.f32 %v201, %v216
      %v218 = vadd.f32 %v197, %v216
      %v219 = vlaneseq
      %v220 = vand.u32 %v219, 127
      %v221 = vmov %v220
      %v222 = vlaneseq
      %v223 = vshrl.u32 %v222, 7
      %v224 = vmov %v223
      %s225 = smov [#allocation14]
      %v226 = vlaneseq
      %v227 = vand.u32 %v226, 127
      %vm228 = vcmp.ge.s32.totalorder %v227, 0
      %vm229 = vcmp.lt.s32.totalorder %v227, 8
      %vm230 = vmand %vm228, %vm229
      %v231 = vld [vmem:[%s225] sm:$0xff]
      %v232 = vsel %vm230, %v231, 0.0
      %v233 = vmul.f32 %v232, %v232
      %v234 = vadd.f32 %v217, %v233
      %v235 = vadd.f32 %v218, %v233
      %v236 = vlaneseq
      %v237 = vand.u32 %v236, 127
      %v238 = vmov %v237
      %v239 = vlaneseq
      %v240 = vshrl.u32 %v239, 7
      %v241 = vmov %v240
      %s242 = smov [#allocation15]
      %v243 = vlaneseq
      %v244 = vand.u32 %v243, 127
      %vm245 = vcmp.ge.s32.totalorder %v244, 0
      %vm246 = vcmp.lt.s32.totalorder %v244, 8
      %vm247 = vmand %vm245, %vm246
      %v248 = vld [vmem:[%s242] sm:$0xff]
      %v249 = vsel %vm247, %v248, 0.0
      %v250 = vmul.f32 %v249, %v249
      %vm253 = vcmp.eq.s32.totalorder %v241, %v238
      %v254 = vsel %vm253, 0.0, %v250
      %v255 = vadd.f32 %v234, %v254
      %v256 = vadd.f32 %v235, %v250
      %257 = vadd.xlane.f32.xlu0 %v256
      %v258 = vpop.xlane.xlu0 %257
      %v259 = vrot.slane %v258, 4
      %v260 = vadd.f32 %v258, %v259
      %v261 = vrot.slane %v260, 2
      %v262 = vadd.f32 %v260, %v261
      %v263 = vrot.slane %v262, 1
      %v264 = vadd.f32 %v262, %v263
      %265 = vadd.xlane.f32.xlu0 %v255
      %v266 = vpop.xlane.xlu0 %265
      %v267 = vrot.slane %v266, 4
      %v268 = vadd.f32 %v266, %v267
      %v269 = vrot.slane %v268, 2
      %v270 = vadd.f32 %v268, %v269
      %v271 = vrot.slane %v270, 1
      %v272 = vadd.f32 %v270, %v271
      %s273 = vtos %v272
      %s274 = vtos %v264
      %s275 = smul.f32 1e-10, %s274
      %p276 = scmp.le.f32.partialorder %s273, %s275
      %p277 = scmp.ge.s32.totalorder %s182, 15
      %p278 = por %p276, %p277
    $region140: #{custom-call.2} parent=1 // loop_header_branch
      %726 = sbr.rel (%p278) target = $region144
    $region141: #{custom-call.2} parent=1 // loop_body
      loop: start=0, step=1, limit=15
      $region145: #{custom-call.2} parent=141 // loop_pre_header
        _
      $region146: #{custom-call.2} parent=141 // loop_header
        %s280 = sphi 0, %s284
        %p281 = scmp.ge.s32.totalorder %s280, 15
      $region147: #{custom-call.2} parent=141 // loop_header_branch
        %283 = sbr.rel (%p281) target = $region151
      $region148: #{custom-call.2} parent=141 // loop_body
        #allocation16 [shape = 'f32[1024]{0}', space=vmem, size = 0x1000, scoped, tag = 'a_tl_diag vmem']
        #allocation17 [shape = 'f32[1024]{0}', space=vmem, size = 0x1000, scoped, tag = 'a_tr_diag vmem']
        #allocation18 [shape = 'f32[1024]{0}', space=vmem, size = 0x1000, scoped, tag = 'a_br_diag vmem']
        #allocation19 [shape = 'f32[1024]{0}', space=vmem, size = 0x1000, scoped, tag = 'rt1 vmem']
        #allocation20 [shape = 'f32[1024]{0}', space=vmem, size = 0x1000, scoped, tag = 'rt2 vmem']
        #allocation21 [shape = 'f32[1024]{0}', space=vmem, size = 0x1000, scoped, tag = 'c vmem']
        #allocation22 [shape = 'f32[1024]{0}', space=vmem, size = 0x1000, scoped, tag = 's vmem']
        #allocation23 [shape = 'f32[4096]{0}', space=vmem, size = 0x4000, scoped, tag = 'c broadcast']
        #allocation24 [shape = 'f32[4096]{0}', space=vmem, size = 0x4000, scoped, tag = 's broadcast']
        %s285 = smov [#allocation12]
        %s286 = smov [#allocation16]
        %v287 = vlaneseq
        %v288 = vand.u32 %v287, 127
        %v289 = vmov %v288
        %v290 = vlaneseq
        %v291 = vshrl.u32 %v290, 7
        %v292 = vmov %v291
        %v293 = vld [vmem:[%s285] sm:$0xff]
        %vm296 = vcmp.eq.s32.totalorder %v292, %v289
        %v297 = vsel %vm296, %v293, 0.0
        %v298 = vrot.slane %v297, 4
        %v299 = vadd.f32 %v297, %v298
        %v300 = vrot.slane %v299, 2
        %v301 = vadd.f32 %v299, %v300
        %v302 = vrot.slane %v301, 1
        %v303 = vadd.f32 %v301, %v302
        %304 = vst [vmem:[%s286] sm:$0x1] %v303
        %s305 = smov [#allocation13]
        %s306 = smov [#allocation17]
        %v307 = vlaneseq
        %v308 = vand.u32 %v307, 127
        %v309 = vmov %v308
        %v310 = vlaneseq
        %v311 = vshrl.u32 %v310, 7
        %v312 = vmov %v311
        %v313 = vld [vmem:[%s305] sm:$0xff]
        %vm316 = vcmp.eq.s32.totalorder %v312, %v309
        %v317 = vsel %vm316, %v313, 0.0
        %v318 = vrot.slane %v317, 4
        %v319 = vadd.f32 %v317, %v318
        %v320 = vrot.slane %v319, 2
        %v321 = vadd.f32 %v319, %v320
        %v322 = vrot.slane %v321, 1
        %v323 = vadd.f32 %v321, %v322
        %324 = vst [vmem:[%s306] sm:$0x1] %v323
        %s325 = smov [#allocation15]
        %s326 = smov [#allocation18]
        %v327 = vlaneseq
        %v328 = vand.u32 %v327, 127
        %v329 = vmov %v328
        %v330 = vlaneseq
        %v331 = vshrl.u32 %v330, 7
        %v332 = vmov %v331
        %v333 = vld [vmem:[%s325] sm:$0xff]
        %vm336 = vcmp.eq.s32.totalorder %v332, %v329
        %v337 = vsel %vm336, %v333, 0.0
        %v338 = vrot.slane %v337, 4
        %v339 = vadd.f32 %v337, %v338
        %v340 = vrot.slane %v339, 2
        %v341 = vadd.f32 %v339, %v340
        %v342 = vrot.slane %v341, 1
        %v343 = vadd.f32 %v341, %v342
        %344 = vst [vmem:[%s326] sm:$0x1] %v343
        %s345 = smov [#allocation21]
        %s346 = smov [#allocation22]
        %s347 = smov [#allocation16]
        %v348 = vld [vmem:[%s347] sm:$0xff]
        %s349 = smov [#allocation17]
        %v350 = vld [vmem:[%s349] sm:$0xff]
        %s351 = smov [#allocation18]
        %v352 = vld [vmem:[%s351] sm:$0xff]
        %v353 = vsub.f32 %v352, %v348
        %v354 = vmul.f32 2.0, %v350
        %v355 = vrcp.pop %v354
        %v356 = vmul.f32 %v353, %v355
        %vm357 = vcmp.ge.f32.partialorder %v356, 0.0
        %v358 = vmul.f32 %v356, %v356
        %v359 = vadd.f32 1.0, %v358
        %v360 = vrsqrt.pop %v359
        %v361 = vmul.f32 %v359, %v360
        %vm362 = vcmp.eq.f32.partialorder %v359, inf
        %v363 = vsel %vm362, %v359, %v361
        %vm364 = vcmp.eq.f32.partialorder %v359, 0.0
        %v365 = vand.u32 %v359, 2147483648
        %v366 = vsel %vm364, %v365, %v363
        %v367 = vxor.u32 %v366, 2147483648
        %v368 = vsel %vm357, %v366, %v367
        %v369 = vadd.f32 %v356, %v368
        %v370 = vrcp.pop %v369
        %v371 = vand.u32 2147483647, %v348
        %v372 = vand.u32 2147483647, %v350
        %v373 = vand.u32 2147483647, %v352
        %v374 = vmin.f32 %v371, %v373
        %v375 = vmul.f32 1.1920929e-08, %v374
        %vm376 = vcmp.le.f32.partialorder %v372, %v375
        %v377 = vsel %vm376, 0.0, %v370
        %v378 = vmul.f32 %v377, %v377
        %v379 = vadd.f32 1.0, %v378
        %v380 = vrsqrt.pop %v379
        %v381 = vmul.f32 %v377, %v380
        %v382 = vmul.f32 %v377, %v350
        %v383 = vsub.f32 %v348, %v382
        %v384 = vmul.f32 %v377, %v350
        %v385 = vadd.f32 %v352, %v384
        %s386 = smov [#allocation19]
        %387 = vst [vmem:[%s386] sm:$0xff] %v383
        %s388 = smov [#allocation20]
        %389 = vst [vmem:[%s388] sm:$0xff] %v385
        %s390 = smov %s345
        %391 = vst [vmem:[%s390] sm:$0xff] %v380
        %s392 = smov %s346
        %393 = vst [vmem:[%s392] sm:$0xff] %v381
        %s394 = smov [#allocation21]
        %v395 = vld [vmem:[%s394] ss:$0 sm:$0xff]
        %v396 = vlaneseq
        %v397 = vand.u32 %v396, 127
        %v398 = vmov %v397
        %v399 = vlaneseq
        %v400 = vshrl.u32 %v399, 7
        %v401 = vmov %v400
        %vm403 = vcmp.eq.s32.totalorder %v401, %v398
        %v404 = vsel %vm403, %v395, 0.0
        %405 = vadd.xlane.f32.xlu0 %v404
        %v406 = vpop.xlane.xlu0 %405
        %s407 = smov [#allocation23]
        %408 = vst [vmem:[%s407] sm:$0xff] %v406
        %s409 = smov [#allocation22]
        %v410 = vld [vmem:[%s409] ss:$0 sm:$0xff]
        %v411 = vlaneseq
        %v412 = vand.u32 %v411, 127
        %v413 = vmov %v412
        %v414 = vlaneseq
        %v415 = vshrl.u32 %v414, 7
        %v416 = vmov %v415
        %vm418 = vcmp.eq.s32.totalorder %v416, %v413
        %v419 = vsel %vm418, %v410, 0.0
        %420 = vadd.xlane.f32.xlu0 %v419
        %v421 = vpop.xlane.xlu0 %420
        %s422 = smov [#allocation24]
        %423 = vst [vmem:[%s422] sm:$0xff] %v421
        %s424 = smov [#allocation23]
        %v425 = vld [vmem:[%s424] sm:$0xff]
        %s426 = smov [#allocation24]
        %v427 = vld [vmem:[%s426] sm:$0xff]
        %s428 = smov [#allocation12]
        %s429 = smov [#allocation13]
        %s430 = smov [#allocation14]
        %s431 = smov [#allocation15]
        %v432 = vld [vmem:[%s428] sm:$0xff]
        %v433 = vld [vmem:[%s429] sm:$0xff]
        %v434 = vld [vmem:[%s430] sm:$0xff]
        %v435 = vld [vmem:[%s431] sm:$0xff]
        %v436 = vmul.f32 %v425, %v432
        %v437 = vmul.f32 %v427, %v434
        %v438 = vsub.f32 %v436, %v437
        %v439 = vmul.f32 %v425, %v433
        %v440 = vmul.f32 %v427, %v435
        %v441 = vsub.f32 %v439, %v440
        %v442 = vmul.f32 %v427, %v432
        %v443 = vmul.f32 %v425, %v434
        %v444 = vadd.f32 %v442, %v443
        %v445 = vmul.f32 %v427, %v433
        %v446 = vmul.f32 %v425, %v435
        %v447 = vadd.f32 %v445, %v446
        %448 = vst [vmem:[%s428] sm:$0xff] %v438
        %449 = vst [vmem:[%s429] sm:$0xff] %v441
        %450 = vst [vmem:[%s430] sm:$0xff] %v444
        %451 = vst [vmem:[%s431] sm:$0xff] %v447
        %s452 = smov [#allocation21]
        %v453 = vld [vmem:[%s452] ss:$0 sm:$0xff]
        %s454 = smov [#allocation22]
        %v455 = vld [vmem:[%s454] ss:$0 sm:$0xff]
        %s456 = smov [#allocation12]
        %s457 = smov [#allocation13]
        %s458 = smov [#allocation14]
        %s459 = smov [#allocation15]
        %v460 = vld [vmem:[%s456] sm:$0xff]
        %v461 = vld [vmem:[%s457] sm:$0xff]
        %v462 = vld [vmem:[%s458] sm:$0xff]
        %v463 = vld [vmem:[%s459] sm:$0xff]
        %v464 = vmul.f32 %v453, %v460
        %v465 = vmul.f32 %v455, %v461
        %v466 = vsub.f32 %v464, %v465
        %v467 = vmul.f32 %v455, %v460
        %v468 = vmul.f32 %v453, %v461
        %v469 = vadd.f32 %v467, %v468
        %v470 = vmul.f32 %v453, %v462
        %v471 = vmul.f32 %v455, %v463
        %v472 = vsub.f32 %v470, %v471
        %v473 = vmul.f32 %v455, %v462
        %v474 = vmul.f32 %v453, %v463
        %v475 = vadd.f32 %v473, %v474
        %476 = vst [vmem:[%s456] sm:$0xff] %v466
        %477 = vst [vmem:[%s457] sm:$0xff] %v469
        %478 = vst [vmem:[%s458] sm:$0xff] %v472
        %479 = vst [vmem:[%s459] sm:$0xff] %v475
        %s480 = smov [#allocation12]
        %s481 = smov [#allocation19]
        %v482 = vlaneseq
        %v483 = vand.u32 %v482, 127
        %v484 = vmov %v483
        %v485 = vlaneseq
        %v486 = vshrl.u32 %v485, 7
        %v487 = vmov %v486
        %v488 = vld [vmem:[%s481] ss:$0 sm:$0xff]
        %v489 = vld [vmem:[%s480] sm:$0xff]
        %vm492 = vcmp.eq.s32.totalorder %v487, %v484
        %v493 = vsel %vm492, %v488, %v489
        %494 = vst [vmem:[%s480] sm:$0xff] %v493
        %s495 = smov [#allocation13]
        %v496 = vlaneseq
        %v497 = vand.u32 %v496, 127
        %v498 = vmov %v497
        %v499 = vlaneseq
        %v500 = vshrl.u32 %v499, 7
        %v501 = vmov %v500
        %v502 = vld [vmem:[%s495] sm:$0xff]
        %vm505 = vcmp.eq.s32.totalorder %v501, %v498
        %v506 = vsel %vm505, 0.0, %v502
        %507 = vst [vmem:[%s495] sm:$0xff] %v506
        %s508 = smov [#allocation14]
        %v509 = vlaneseq
        %v510 = vand.u32 %v509, 127
        %v511 = vmov %v510
        %v512 = vlaneseq
        %v513 = vshrl.u32 %v512, 7
        %v514 = vmov %v513
        %v515 = vld [vmem:[%s508] sm:$0xff]
        %vm518 = vcmp.eq.s32.totalorder %v514, %v511
        %v519 = vsel %vm518, 0.0, %v515
        %520 = vst [vmem:[%s508] sm:$0xff] %v519
        %s521 = smov [#allocation15]
        %s522 = smov [#allocation20]
        %v523 = vlaneseq
        %v524 = vand.u32 %v523, 127
        %v525 = vmov %v524
        %v526 = vlaneseq
        %v527 = vshrl.u32 %v526, 7
        %v528 = vmov %v527
        %v529 = vld [vmem:[%s522] ss:$0 sm:$0xff]
        %v530 = vld [vmem:[%s521] sm:$0xff]
        %vm533 = vcmp.eq.s32.totalorder %v528, %v525
        %v534 = vsel %vm533, %v529, %v530
        %535 = vst [vmem:[%s521] sm:$0xff] %v534
        %s536 = smov [#allocation12]
        %s537 = smov [#allocation13]
        %v538 = vld [vmem:[%s537] sm:$0xff]
        %539 = vrot.lane.b32.xlu0 %v538, 1
        %v540 = vpop.permute.xlu0 %539
        %v541 = vld [vmem:[%s536] sm:$0xff]
        %v542 = vld [vmem:[%s536] sm:$0xff]
        %543 = vrot.lane.b32.xlu0 %v542, 1
        %v544 = vpop.permute.xlu0 %543
        %v545 = vlaneseq
        %v546 = vand.u32 %v545, 127
        %vm547 = vcmp.eq.s32.totalorder %v546, 0
        %v548 = vsel %vm547, %v542, %v544
        %v549 = vlaneseq
        %v550 = vand.u32 %v549, 127
        %vm551 = vcmp.eq.s32.totalorder %v550, 1
        %v552 = vsel %vm551, %v540, %v548
        %v553 = vlaneseq
        %v554 = vand.u32 %v553, 127
        %vm555 = vcmp.ge.s32.totalorder %v554, 0
        %vm556 = vcmp.lt.s32.totalorder %v554, 8
        %vm557 = vmand %vm555, %vm556
        %v558 = vsel %vm557, %v552, 0.0
        %v559 = vld [vmem:[%s537] sm:$0xff]
        %560 = vrot.lane.b32.xlu0 %v559, 127
        %v561 = vpop.permute.xlu0 %560
        %v562 = vlaneseq
        %v563 = vand.u32 %v562, 127
        %vm564 = vcmp.eq.s32.totalorder %v563, 7
        %v565 = vsel %vm564, %v541, %v561
        %566 = vst [vmem:[%s536] sm:$0xff] %v558
        %567 = vst [vmem:[%s537] sm:$0xff] %v565
        %s568 = smov [#allocation14]
        %s569 = smov [#allocation15]
        %v570 = vld [vmem:[%s569] sm:$0xff]
        %571 = vrot.lane.b32.xlu0 %v570, 1
        %v572 = vpop.permute.xlu0 %571
        %v573 = vld [vmem:[%s568] sm:$0xff]
        %v574 = vld [vmem:[%s568] sm:$0xff]
        %575 = vrot.lane.b32.xlu0 %v574, 1
        %v576 = vpop.permute.xlu0 %575
        %v577 = vlaneseq
        %v578 = vand.u32 %v577, 127
        %vm579 = vcmp.eq.s32.totalorder %v578, 0
        %v580 = vsel %vm579, %v574, %v576
        %v581 = vlaneseq
        %v582 = vand.u32 %v581, 127
        %vm583 = vcmp.eq.s32.totalorder %v582, 1
        %v584 = vsel %vm583, %v572, %v580
        %v585 = vlaneseq
        %v586 = vand.u32 %v585, 127
        %vm587 = vcmp.ge.s32.totalorder %v586, 0
        %vm588 = vcmp.lt.s32.totalorder %v586, 8
        %vm589 = vmand %vm587, %vm588
        %v590 = vsel %vm589, %v584, 0.0
        %v591 = vld [vmem:[%s569] sm:$0xff]
        %592 = vrot.lane.b32.xlu0 %v591, 127
        %v593 = vpop.permute.xlu0 %592
        %v594 = vlaneseq
        %v595 = vand.u32 %v594, 127
        %vm596 = vcmp.eq.s32.totalorder %v595, 7
        %v597 = vsel %vm596, %v573, %v593
        %598 = vst [vmem:[%s568] sm:$0xff] %v590
        %599 = vst [vmem:[%s569] sm:$0xff] %v597
        %s600 = smov [#allocation12]
        %s601 = smov [#allocation14]
        %v602 = vld [vmem:[%s600] ss:$0 sm:$0xff]
        %s604 = scalar_lea.vmem %s600, 4294967295
        %v605 = vld [vmem:[%s604] sm:$0xfe]
        %v606 = vlaneseq
        %v607 = vshrl.u32 %v606, 7
        %vm608 = vcmp.eq.s32.totalorder %v607, 0
        %v609 = vsel %vm608, %v602, %v605
        %s610 = scalar_lea.vmem %s600, 7
        %v611 = vld [vmem:[%s610] ss:$0 sm:$0xff]
        %612 = vst [vmem:[%s600] sm:$0xff] %v609
        %v613 = vld [vmem:[%s601] ss:$0 sm:$0xff]
        %s614 = scalar_lea.vmem %s600, 1
        %615 = vst [vmem:[%s614] sm:$0x1] %v613
        %s616 = scalar_lea.vmem %s601, 1
        %v617 = vld [vmem:[%s616] sm:$0x7f]
        %v618 = vlaneseq
        %v619 = vshrl.u32 %v618, 7
        %vm620 = vcmp.eq.s32.totalorder %v619, 7
        %v621 = vsel %vm620, %v611, %v617
        %v622 = vld [vmem:[%s601] ss:$0 sm:$0xff]
        %623 = vst [vmem:[%s601] sm:$0xff] %v621
        %s624 = smov [#allocation13]
        %s625 = smov [#allocation15]
        %v626 = vld [vmem:[%s624] ss:$0 sm:$0xff]
        %s628 = scalar_lea.vmem %s624, 4294967295
        %v629 = vld [vmem:[%s628] sm:$0xfe]
        %v630 = vlaneseq
        %v631 = vshrl.u32 %v630, 7
        %vm632 = vcmp.eq.s32.totalorder %v631, 0
        %v633 = vsel %vm632, %v626, %v629
        %s634 = scalar_lea.vmem %s624, 7
        %v635 = vld [vmem:[%s634] ss:$0 sm:$0xff]
        %636 = vst [vmem:[%s624] sm:$0xff] %v633
        %v637 = vld [vmem:[%s625] ss:$0 sm:$0xff]
        %s638 = scalar_lea.vmem %s624, 1
        %639 = vst [vmem:[%s638] sm:$0x1] %v637
        %s640 = scalar_lea.vmem %s625, 1
        %v641 = vld [vmem:[%s640] sm:$0x7f]
        %v642 = vlaneseq
        %v643 = vshrl.u32 %v642, 7
        %vm644 = vcmp.eq.s32.totalorder %v643, 7
        %v645 = vsel %vm644, %v635, %v641
        %v646 = vld [vmem:[%s625] ss:$0 sm:$0xff]
        %647 = vst [vmem:[%s625] sm:$0xff] %v645
        %s648 = smov [#allocation23]
        %v649 = vld [vmem:[%s648] sm:$0xff]
        %s650 = smov [#allocation24]
        %v651 = vld [vmem:[%s650] sm:$0xff]
        %s652 = smov [#allocation8]
        %s653 = smov [#allocation9]
        %s654 = smov [#allocation10]
        %s655 = smov [#allocation11]
        %v656 = vld [vmem:[%s652] sm:$0xff]
        %v657 = vld [vmem:[%s653] sm:$0xff]
        %v658 = vld [vmem:[%s654] sm:$0xff]
        %v659 = vld [vmem:[%s655] sm:$0xff]
        %v660 = vmul.f32 %v649, %v656
        %v661 = vmul.f32 %v651, %v658
        %v662 = vsub.f32 %v660, %v661
        %v663 = vmul.f32 %v649, %v657
        %v664 = vmul.f32 %v651, %v659
        %v665 = vsub.f32 %v663, %v664
        %v666 = vmul.f32 %v651, %v656
        %v667 = vmul.f32 %v649, %v658
        %v668 = vadd.f32 %v666, %v667
        %v669 = vmul.f32 %v651, %v657
        %v670 = vmul.f32 %v649, %v659
        %v671 = vadd.f32 %v669, %v670
        %672 = vst [vmem:[%s652] sm:$0xff] %v662
        %673 = vst [vmem:[%s653] sm:$0xff] %v665
        %674 = vst [vmem:[%s654] sm:$0xff] %v668
        %675 = vst [vmem:[%s655] sm:$0xff] %v671
        %s676 = smov [#allocation8]
        %s677 = smov [#allocation10]
        %v678 = vld [vmem:[%s676] ss:$0 sm:$0xff]
        %s680 = scalar_lea.vmem %s676, 4294967295
        %v681 = vld [vmem:[%s680] sm:$0xfe]
        %v682 = vlaneseq
        %v683 = vshrl.u32 %v682, 7
        %vm684 = vcmp.eq.s32.totalorder %v683, 0
        %v685 = vsel %vm684, %v678, %v681
        %s686 = scalar_lea.vmem %s676, 7
        %v687 = vld [vmem:[%s686] ss:$0 sm:$0xff]
        %688 = vst [vmem:[%s676] sm:$0xff] %v685
        %v689 = vld [vmem:[%s677] ss:$0 sm:$0xff]
        %s690 = scalar_lea.vmem %s676, 1
        %691 = vst [vmem:[%s690] sm:$0x1] %v689
        %s692 = scalar_lea.vmem %s677, 1
        %v693 = vld [vmem:[%s692] sm:$0x7f]
        %v694 = vlaneseq
        %v695 = vshrl.u32 %v694, 7
        %vm696 = vcmp.eq.s32.totalorder %v695, 7
        %v697 = vsel %vm696, %v687, %v693
        %v698 = vld [vmem:[%s677] ss:$0 sm:$0xff]
        %699 = vst [vmem:[%s677] sm:$0xff] %v697
        %s700 = smov [#allocation9]
        %s701 = smov [#allocation11]
        %v702 = vld [vmem:[%s700] ss:$0 sm:$0xff]
        %s704 = scalar_lea.vmem %s700, 4294967295
        %v705 = vld [vmem:[%s704] sm:$0xfe]
        %v706 = vlaneseq
        %v707 = vshrl.u32 %v706, 7
        %vm708 = vcmp.eq.s32.totalorder %v707, 0
        %v709 = vsel %vm708, %v702, %v705
        %s710 = scalar_lea.vmem %s700, 7
        %v711 = vld [vmem:[%s710] ss:$0 sm:$0xff]
        %712 = vst [vmem:[%s700] sm:$0xff] %v709
        %v713 = vld [vmem:[%s701] ss:$0 sm:$0xff]
        %s714 = scalar_lea.vmem %s700, 1
        %715 = vst [vmem:[%s714] sm:$0x1] %v713
        %s716 = scalar_lea.vmem %s701, 1
        %v717 = vld [vmem:[%s716] sm:$0x7f]
        %v718 = vlaneseq
        %v719 = vshrl.u32 %v718, 7
        %vm720 = vcmp.eq.s32.totalorder %v719, 7
        %v721 = vsel %vm720, %v711, %v717
        %v722 = vld [vmem:[%s701] ss:$0 sm:$0xff]
        %723 = vst [vmem:[%s701] sm:$0xff] %v721
      $region149: #{custom-call.2} parent=141 // loop_footer
        %s284 = sadd.s32 1, %s280
      $region150: #{custom-call.2} parent=141 // loop_footer_branch
        %279 = sbr.rel target = $region146
      $region151: #{custom-call.2} parent=141 // loop_exit
        _
      %s724 = sadd.s32 %s182, 1
    $region142: #{custom-call.2} parent=1 // loop_footer
      _
    $region143: #{custom-call.2} parent=1 // loop_footer_branch
      %181 = sbr.rel target = $region139
    $region144: #{custom-call.2} parent=1 // loop_exit
      _
    %s727 = smov [#allocation12]
    %s728 = smov [#allocation4]
    %v729 = vlaneseq
    %v730 = vand.u32 %v729, 127
    %v731 = vmov %v730
    %v732 = vlaneseq
    %v733 = vshrl.u32 %v732, 7
    %v734 = vmov %v733
    %v735 = vld [vmem:[%s727] sm:$0xff]
    %vm738 = vcmp.eq.s32.totalorder %v734, %v731
    %v739 = vsel %vm738, %v735, 0.0
    %v740 = vrot.slane %v739, 4
    %v741 = vadd.f32 %v739, %v740
    %v742 = vrot.slane %v741, 2
    %v743 = vadd.f32 %v741, %v742
    %v744 = vrot.slane %v743, 1
    %v745 = vadd.f32 %v743, %v744
    %746 = vst [vmem:[%s728] sm:$0x1] %v745
    %s747 = smov [#allocation15]
    %s748 = smov [#allocation6]
    %v749 = vlaneseq
    %v750 = vand.u32 %v749, 127
    %v751 = vmov %v750
    %v752 = vlaneseq
    %v753 = vshrl.u32 %v752, 7
    %v754 = vmov %v753
    %v755 = vld [vmem:[%s747] sm:$0xff]
    %vm758 = vcmp.eq.s32.totalorder %v754, %v751
    %v759 = vsel %vm758, %v755, 0.0
    %v760 = vrot.slane %v759, 4
    %v761 = vadd.f32 %v759, %v760
    %v762 = vrot.slane %v761, 2
    %v763 = vadd.f32 %v761, %v762
    %v764 = vrot.slane %v763, 1
    %v765 = vadd.f32 %v763, %v764
    %766 = vst [vmem:[%s748] sm:$0x1] %v765
    %s768 = sshllo.u32 0, 1
    %v770 = vld [vmem:[#allocation4] sm:%s768]
    %s771 = sshllo.u32 0, 1
    %772 = vst [vmem:[#allocation5] sm:%s771] %v770
    %s774 = sshllo.u32 0, 1
    %v776 = vld [vmem:[#allocation6] sm:%s774]
    %s777 = sshllo.u32 0, 1
    %778 = vst [vmem:[#allocation7] sm:%s777] %v776
    // Predicated region
    $region152: #{custom-call.2} parent=1 // pred_check
      _
    $region153: #{custom-call.2} parent=1 // pred_check_branch
      %780 = sbr.rel (0) target = $region155
    $region154: #{custom-call.2} parent=1 // pred_region
      // Predicated region
      $region156: #{custom-call.2} parent=154 // pred_check
        _
      $region157: #{custom-call.2} parent=154 // pred_check_branch
        %782 = sbr.rel (0) target = $region159
      $region158: #{custom-call.2} parent=154 // pred_region
        // Predicated region
        $region160: #{custom-call.2} parent=158 // pred_check
          _
        $region161: #{custom-call.2} parent=158 // pred_check_branch
          %784 = sbr.rel target = $region163
        $region162: #{custom-call.2} parent=158 // pred_region
          // Predicated region
          $region175: #{custom-call.2} parent=162 // pred_check
            _
          $region176: #{custom-call.2} parent=162 // pred_check_branch
            %799 = sbr.rel (0) target = $region178
          $region177: #{custom-call.2} parent=162 // pred_region
            loop: start=0, step=1, limit=1
            $region179: #{custom-call.2} parent=177 // loop_pre_header
              _
            $region180: #{custom-call.2} parent=177 // loop_header
              %s802 = sphi 0, %s806
              %p803 = scmp.ge.s32.totalorder %s802, 1
              %s807 = sphi [#allocation5], [#allocation5]
              %s808 = sphi %s4, %s4
            $region181: #{custom-call.2} parent=177 // loop_header_branch
              %805 = sbr.rel (%p803) target = $region185
            $region182: #{custom-call.2} parent=177 // loop_body
              %v809 = vld [vmem:[%s807] sm:$0x1]
              %810 = vst [vmem:[%s808] sm:$0x1] %v809
            $region183: #{custom-call.2} parent=177 // loop_footer
              %s806 = sadd.s32 1, %s802
            $region184: #{custom-call.2} parent=177 // loop_footer_branch
              %801 = sbr.rel target = $region180
            $region185: #{custom-call.2} parent=177 // loop_exit
              _
          $region178: #{custom-call.2} parent=162 // pred_fallthru
            _
        $region163: #{custom-call.2} parent=158 // pred_fallthru
          _
        // Predicated region
        $region164: #{custom-call.2} parent=158 // pred_check
          _
        $region165: #{custom-call.2} parent=158 // pred_check_branch
          %786 = sbr.rel (0) target = $region167
        $region166: #{custom-call.2} parent=158 // pred_region
          loop: start=0, step=1, limit=1
          $region168: #{custom-call.2} parent=166 // loop_pre_header
            _
          $region169: #{custom-call.2} parent=166 // loop_header
            %s789 = sphi 0, %s793
            %p790 = scmp.ge.s32.totalorder %s789, 1
            %s794 = sphi [#allocation5], [#allocation5]
            %s795 = sphi %s4, %s4
          $region170: #{custom-call.2} parent=166 // loop_header_branch
            %792 = sbr.rel (%p790) target = $region174
          $region171: #{custom-call.2} parent=166 // loop_body
            %v796 = vld [vmem:[%s794] sm:$0x1]
            %797 = vst [vmem:[%s795] sm:$0x1] %v796
          $region172: #{custom-call.2} parent=166 // loop_footer
            %s793 = sadd.s32 1, %s789
          $region173: #{custom-call.2} parent=166 // loop_footer_branch
            %788 = sbr.rel target = $region169
          $region174: #{custom-call.2} parent=166 // loop_exit
            _
        $region167: #{custom-call.2} parent=158 // pred_fallthru
          _
      $region159: #{custom-call.2} parent=154 // pred_fallthru
        _
      %811 = vnop
    $region155: #{custom-call.2} parent=1 // pred_fallthru
      _
    // Predicated region
    $region186: #{custom-call.2} parent=1 // pred_check
      _
    $region187: #{custom-call.2} parent=1 // pred_check_branch
      %813 = sbr.rel (0) target = $region189
    $region188: #{custom-call.2} parent=1 // pred_region
      // Predicated region
      $region190: #{custom-call.2} parent=188 // pred_check
        _
      $region191: #{custom-call.2} parent=188 // pred_check_branch
        %815 = sbr.rel (0) target = $region193
      $region192: #{custom-call.2} parent=188 // pred_region
        // Predicated region
        $region194: #{custom-call.2} parent=192 // pred_check
          _
        $region195: #{custom-call.2} parent=192 // pred_check_branch
          %817 = sbr.rel target = $region197
        $region196: #{custom-call.2} parent=192 // pred_region
          // Predicated region
          $region209: #{custom-call.2} parent=196 // pred_check
            _
          $region210: #{custom-call.2} parent=196 // pred_check_branch
            %832 = sbr.rel (0) target = $region212
          $region211: #{custom-call.2} parent=196 // pred_region
            loop: start=0, step=1, limit=1
            $region213: #{custom-call.2} parent=211 // loop_pre_header
              _
            $region214: #{custom-call.2} parent=211 // loop_header
              %s835 = sphi 0, %s839
              %p836 = scmp.ge.s32.totalorder %s835, 1
              %s840 = sphi [#allocation7], [#allocation7]
              %s841 = sphi %s5, %s5
            $region215: #{custom-call.2} parent=211 // loop_header_branch
              %838 = sbr.rel (%p836) target = $region219
            $region216: #{custom-call.2} parent=211 // loop_body
              %v842 = vld [vmem:[%s840] sm:$0x1]
              %843 = vst [vmem:[%s841] sm:$0x1] %v842
            $region217: #{custom-call.2} parent=211 // loop_footer
              %s839 = sadd.s32 1, %s835
            $region218: #{custom-call.2} parent=211 // loop_footer_branch
              %834 = sbr.rel target = $region214
            $region219: #{custom-call.2} parent=211 // loop_exit
              _
          $region212: #{custom-call.2} parent=196 // pred_fallthru
            _
        $region197: #{custom-call.2} parent=192 // pred_fallthru
          _
        // Predicated region
        $region198: #{custom-call.2} parent=192 // pred_check
          _
        $region199: #{custom-call.2} parent=192 // pred_check_branch
          %819 = sbr.rel (0) target = $region201
        $region200: #{custom-call.2} parent=192 // pred_region
          loop: start=0, step=1, limit=1
          $region202: #{custom-call.2} parent=200 // loop_pre_header
            _
          $region203: #{custom-call.2} parent=200 // loop_header
            %s822 = sphi 0, %s826
            %p823 = scmp.ge.s32.totalorder %s822, 1
            %s827 = sphi [#allocation7], [#allocation7]
            %s828 = sphi %s5, %s5
          $region204: #{custom-call.2} parent=200 // loop_header_branch
            %825 = sbr.rel (%p823) target = $region208
          $region205: #{custom-call.2} parent=200 // loop_body
            %v829 = vld [vmem:[%s827] sm:$0x1]
            %830 = vst [vmem:[%s828] sm:$0x1] %v829
          $region206: #{custom-call.2} parent=200 // loop_footer
            %s826 = sadd.s32 1, %s822
          $region207: #{custom-call.2} parent=200 // loop_footer_branch
            %821 = sbr.rel target = $region203
          $region208: #{custom-call.2} parent=200 // loop_exit
            _
        $region201: #{custom-call.2} parent=192 // pred_fallthru
          _
      $region193: #{custom-call.2} parent=188 // pred_fallthru
        _
      %844 = vnop
    $region189: #{custom-call.2} parent=1 // pred_fallthru
      _
    // Predicated region
    $region220: #{custom-call.2} parent=1 // pred_check
      _
    $region221: #{custom-call.2} parent=1 // pred_check_branch
      %846 = sbr.rel (0) target = $region223
    $region222: #{custom-call.2} parent=1 // pred_region
      // Predicated region
      $region224: #{custom-call.2} parent=222 // pred_check
        _
      $region225: #{custom-call.2} parent=222 // pred_check_branch
        %848 = sbr.rel (0) target = $region227
      $region226: #{custom-call.2} parent=222 // pred_region
        // Predicated region
        $region239: #{custom-call.2} parent=226 // pred_check
          _
        $region240: #{custom-call.2} parent=226 // pred_check_branch
          %863 = sbr.rel (0) target = $region242
        $region241: #{custom-call.2} parent=226 // pred_region
          loop: start=0, step=1, limit=1
          $region243: #{custom-call.2} parent=241 // loop_pre_header
            _
          $region244: #{custom-call.2} parent=241 // loop_header
            %s865 = sphi 0, %s869
            %p866 = scmp.ge.s32.totalorder %s865, 1
            %s870 = sphi [#allocation8], [#allocation8]
            %s871 = sphi %s6, %s6
          $region245: #{custom-call.2} parent=241 // loop_header_branch
            %868 = sbr.rel (%p866) target = $region249
          $region246: #{custom-call.2} parent=241 // loop_body
            %v872 = vld [vmem:[%s870] sm:$0xff]
            %873 = vst [vmem:[%s871] sm:$0xff] %v872
          $region247: #{custom-call.2} parent=241 // loop_footer
            %s869 = sadd.s32 1, %s865
          $region248: #{custom-call.2} parent=241 // loop_footer_branch
            %864 = sbr.rel target = $region244
          $region249: #{custom-call.2} parent=241 // loop_exit
            _
        $region242: #{custom-call.2} parent=226 // pred_fallthru
          _
        // Predicated region
        $region250: #{custom-call.2} parent=226 // pred_check
          _
        $region251: #{custom-call.2} parent=226 // pred_check_branch
          %875 = sbr.rel target = $region253
        $region252: #{custom-call.2} parent=226 // pred_region
          _
        $region253: #{custom-call.2} parent=226 // pred_fallthru
          _
      $region227: #{custom-call.2} parent=222 // pred_fallthru
        _
      // Predicated region
      $region228: #{custom-call.2} parent=222 // pred_check
        _
      $region229: #{custom-call.2} parent=222 // pred_check_branch
        %850 = sbr.rel target = $region231
      $region230: #{custom-call.2} parent=222 // pred_region
        loop: start=0, step=1, limit=1
        $region232: #{custom-call.2} parent=230 // loop_pre_header
          _
        $region233: #{custom-call.2} parent=230 // loop_header
          %s853 = sphi 0, %s857
          %p854 = scmp.ge.s32.totalorder %s853, 1
          %s858 = sphi [#allocation8], [#allocation8]
          %s859 = sphi %s6, %s6
        $region234: #{custom-call.2} parent=230 // loop_header_branch
          %856 = sbr.rel (%p854) target = $region238
        $region235: #{custom-call.2} parent=230 // loop_body
          %v860 = vld [vmem:[%s858] sm:$0xff]
          %861 = vst [vmem:[%s859] sm:$0xff] %v860
        $region236: #{custom-call.2} parent=230 // loop_footer
          %s857 = sadd.s32 1, %s853
        $region237: #{custom-call.2} parent=230 // loop_footer_branch
          %852 = sbr.rel target = $region233
        $region238: #{custom-call.2} parent=230 // loop_exit
          _
      $region231: #{custom-call.2} parent=222 // pred_fallthru
        _
    $region223: #{custom-call.2} parent=1 // pred_fallthru
      _
    %876 = vnop
    // Predicated region
    $region254: #{custom-call.2} parent=1 // pred_check
      _
    $region255: #{custom-call.2} parent=1 // pred_check_branch
      %878 = sbr.rel (0) target = $region257
    $region256: #{custom-call.2} parent=1 // pred_region
      // Predicated region
      $region258: #{custom-call.2} parent=256 // pred_check
        _
      $region259: #{custom-call.2} parent=256 // pred_check_branch
        %880 = sbr.rel (0) target = $region261
      $region260: #{custom-call.2} parent=256 // pred_region
        // Predicated region
        $region273: #{custom-call.2} parent=260 // pred_check
          _
        $region274: #{custom-call.2} parent=260 // pred_check_branch
          %895 = sbr.rel (0) target = $region276
        $region275: #{custom-call.2} parent=260 // pred_region
          loop: start=0, step=1, limit=1
          $region277: #{custom-call.2} parent=275 // loop_pre_header
            _
          $region278: #{custom-call.2} parent=275 // loop_header
            %s897 = sphi 0, %s901
            %p898 = scmp.ge.s32.totalorder %s897, 1
            %s902 = sphi [#allocation9], [#allocation9]
            %s903 = sphi %s7, %s7
          $region279: #{custom-call.2} parent=275 // loop_header_branch
            %900 = sbr.rel (%p898) target = $region283
          $region280: #{custom-call.2} parent=275 // loop_body
            %v904 = vld [vmem:[%s902] sm:$0xff]
            %905 = vst [vmem:[%s903] sm:$0xff] %v904
          $region281: #{custom-call.2} parent=275 // loop_footer
            %s901 = sadd.s32 1, %s897
          $region282: #{custom-call.2} parent=275 // loop_footer_branch
            %896 = sbr.rel target = $region278
          $region283: #{custom-call.2} parent=275 // loop_exit
            _
        $region276: #{custom-call.2} parent=260 // pred_fallthru
          _
        // Predicated region
        $region284: #{custom-call.2} parent=260 // pred_check
          _
        $region285: #{custom-call.2} parent=260 // pred_check_branch
          %907 = sbr.rel target = $region287
        $region286: #{custom-call.2} parent=260 // pred_region
          _
        $region287: #{custom-call.2} parent=260 // pred_fallthru
          _
      $region261: #{custom-call.2} parent=256 // pred_fallthru
        _
      // Predicated region
      $region262: #{custom-call.2} parent=256 // pred_check
        _
      $region263: #{custom-call.2} parent=256 // pred_check_branch
        %882 = sbr.rel target = $region265
      $region264: #{custom-call.2} parent=256 // pred_region
        loop: start=0, step=1, limit=1
        $region266: #{custom-call.2} parent=264 // loop_pre_header
          _
        $region267: #{custom-call.2} parent=264 // loop_header
          %s885 = sphi 0, %s889
          %p886 = scmp.ge.s32.totalorder %s885, 1
          %s890 = sphi [#allocation9], [#allocation9]
          %s891 = sphi %s7, %s7
        $region268: #{custom-call.2} parent=264 // loop_header_branch
          %888 = sbr.rel (%p886) target = $region272
        $region269: #{custom-call.2} parent=264 // loop_body
          %v892 = vld [vmem:[%s890] sm:$0xff]
          %893 = vst [vmem:[%s891] sm:$0xff] %v892
        $region270: #{custom-call.2} parent=264 // loop_footer
          %s889 = sadd.s32 1, %s885
        $region271: #{custom-call.2} parent=264 // loop_footer_branch
          %884 = sbr.rel target = $region267
        $region272: #{custom-call.2} parent=264 // loop_exit
          _
      $region265: #{custom-call.2} parent=256 // pred_fallthru
        _
    $region257: #{custom-call.2} parent=1 // pred_fallthru
      _
    %908 = vnop
    // Predicated region
    $region288: #{custom-call.2} parent=1 // pred_check
      _
    $region289: #{custom-call.2} parent=1 // pred_check_branch
      %910 = sbr.rel (0) target = $region291
    $region290: #{custom-call.2} parent=1 // pred_region
      // Predicated region
      $region292: #{custom-call.2} parent=290 // pred_check
        _
      $region293: #{custom-call.2} parent=290 // pred_check_branch
        %912 = sbr.rel (0) target = $region295
      $region294: #{custom-call.2} parent=290 // pred_region
        // Predicated region
        $region307: #{custom-call.2} parent=294 // pred_check
          _
        $region308: #{custom-call.2} parent=294 // pred_check_branch
          %927 = sbr.rel (0) target = $region310
        $region309: #{custom-call.2} parent=294 // pred_region
          loop: start=0, step=1, limit=1
          $region311: #{custom-call.2} parent=309 // loop_pre_header
            _
          $region312: #{custom-call.2} parent=309 // loop_header
            %s929 = sphi 0, %s933
            %p930 = scmp.ge.s32.totalorder %s929, 1
            %s934 = sphi [#allocation10], [#allocation10]
            %s935 = sphi %s8, %s8
          $region313: #{custom-call.2} parent=309 // loop_header_branch
            %932 = sbr.rel (%p930) target = $region317
          $region314: #{custom-call.2} parent=309 // loop_body
            %v936 = vld [vmem:[%s934] sm:$0xff]
            %937 = vst [vmem:[%s935] sm:$0xff] %v936
          $region315: #{custom-call.2} parent=309 // loop_footer
            %s933 = sadd.s32 1, %s929
          $region316: #{custom-call.2} parent=309 // loop_footer_branch
            %928 = sbr.rel target = $region312
          $region317: #{custom-call.2} parent=309 // loop_exit
            _
        $region310: #{custom-call.2} parent=294 // pred_fallthru
          _
        // Predicated region
        $region318: #{custom-call.2} parent=294 // pred_check
          _
        $region319: #{custom-call.2} parent=294 // pred_check_branch
          %939 = sbr.rel target = $region321
        $region320: #{custom-call.2} parent=294 // pred_region
          _
        $region321: #{custom-call.2} parent=294 // pred_fallthru
          _
      $region295: #{custom-call.2} parent=290 // pred_fallthru
        _
      // Predicated region
      $region296: #{custom-call.2} parent=290 // pred_check
        _
      $region297: #{custom-call.2} parent=290 // pred_check_branch
        %914 = sbr.rel target = $region299
      $region298: #{custom-call.2} parent=290 // pred_region
        loop: start=0, step=1, limit=1
        $region300: #{custom-call.2} parent=298 // loop_pre_header
          _
        $region301: #{custom-call.2} parent=298 // loop_header
          %s917 = sphi 0, %s921
          %p918 = scmp.ge.s32.totalorder %s917, 1
          %s922 = sphi [#allocation10], [#allocation10]
          %s923 = sphi %s8, %s8
        $region302: #{custom-call.2} parent=298 // loop_header_branch
          %920 = sbr.rel (%p918) target = $region306
        $region303: #{custom-call.2} parent=298 // loop_body
          %v924 = vld [vmem:[%s922] sm:$0xff]
          %925 = vst [vmem:[%s923] sm:$0xff] %v924
        $region304: #{custom-call.2} parent=298 // loop_footer
          %s921 = sadd.s32 1, %s917
        $region305: #{custom-call.2} parent=298 // loop_footer_branch
          %916 = sbr.rel target = $region301
        $region306: #{custom-call.2} parent=298 // loop_exit
          _
      $region299: #{custom-call.2} parent=290 // pred_fallthru
        _
    $region291: #{custom-call.2} parent=1 // pred_fallthru
      _
    %940 = vnop
    // Predicated region
    $region322: #{custom-call.2} parent=1 // pred_check
      _
    $region323: #{custom-call.2} parent=1 // pred_check_branch
      %942 = sbr.rel (0) target = $region325
    $region324: #{custom-call.2} parent=1 // pred_region
      // Predicated region
      $region326: #{custom-call.2} parent=324 // pred_check
        _
      $region327: #{custom-call.2} parent=324 // pred_check_branch
        %944 = sbr.rel (0) target = $region329
      $region328: #{custom-call.2} parent=324 // pred_region
        // Predicated region
        $region341: #{custom-call.2} parent=328 // pred_check
          _
        $region342: #{custom-call.2} parent=328 // pred_check_branch
          %959 = sbr.rel (0) target = $region344
        $region343: #{custom-call.2} parent=328 // pred_region
          loop: start=0, step=1, limit=1
          $region345: #{custom-call.2} parent=343 // loop_pre_header
            _
          $region346: #{custom-call.2} parent=343 // loop_header
            %s961 = sphi 0, %s965
            %p962 = scmp.ge.s32.totalorder %s961, 1
            %s966 = sphi [#allocation11], [#allocation11]
            %s967 = sphi %s9, %s9
          $region347: #{custom-call.2} parent=343 // loop_header_branch
            %964 = sbr.rel (%p962) target = $region351
          $region348: #{custom-call.2} parent=343 // loop_body
            %v968 = vld [vmem:[%s966] sm:$0xff]
            %969 = vst [vmem:[%s967] sm:$0xff] %v968
          $region349: #{custom-call.2} parent=343 // loop_footer
            %s965 = sadd.s32 1, %s961
          $region350: #{custom-call.2} parent=343 // loop_footer_branch
            %960 = sbr.rel target = $region346
          $region351: #{custom-call.2} parent=343 // loop_exit
            _
        $region344: #{custom-call.2} parent=328 // pred_fallthru
          _
        // Predicated region
        $region352: #{custom-call.2} parent=328 // pred_check
          _
        $region353: #{custom-call.2} parent=328 // pred_check_branch
          %971 = sbr.rel target = $region355
        $region354: #{custom-call.2} parent=328 // pred_region
          _
        $region355: #{custom-call.2} parent=328 // pred_fallthru
          _
      $region329: #{custom-call.2} parent=324 // pred_fallthru
        _
      // Predicated region
      $region330: #{custom-call.2} parent=324 // pred_check
        _
      $region331: #{custom-call.2} parent=324 // pred_check_branch
        %946 = sbr.rel target = $region333
      $region332: #{custom-call.2} parent=324 // pred_region
        loop: start=0, step=1, limit=1
        $region334: #{custom-call.2} parent=332 // loop_pre_header
          _
        $region335: #{custom-call.2} parent=332 // loop_header
          %s949 = sphi 0, %s953
          %p950 = scmp.ge.s32.totalorder %s949, 1
          %s954 = sphi [#allocation11], [#allocation11]
          %s955 = sphi %s9, %s9
        $region336: #{custom-call.2} parent=332 // loop_header_branch
          %952 = sbr.rel (%p950) target = $region340
        $region337: #{custom-call.2} parent=332 // loop_body
          %v956 = vld [vmem:[%s954] sm:$0xff]
          %957 = vst [vmem:[%s955] sm:$0xff] %v956
        $region338: #{custom-call.2} parent=332 // loop_footer
          %s953 = sadd.s32 1, %s949
        $region339: #{custom-call.2} parent=332 // loop_footer_branch
          %948 = sbr.rel target = $region335
        $region340: #{custom-call.2} parent=332 // loop_exit
          _
      $region333: #{custom-call.2} parent=324 // pred_fallthru
        _
    $region325: #{custom-call.2} parent=1 // pred_fallthru
      _
    %972 = vnop
    // Predicated region
    $region356: #{custom-call.2} parent=1 // pred_check
      _
    $region357: #{custom-call.2} parent=1 // pred_check_branch
      %974 = sbr.rel (0) target = $region359
    $region358: #{custom-call.2} parent=1 // pred_region
      _
    $region359: #{custom-call.2} parent=1 // pred_fallthru
      _
    // Predicated region
    $region360: #{custom-call.2} parent=1 // pred_check
      _
    $region361: #{custom-call.2} parent=1 // pred_check_branch
      %976 = sbr.rel (0) target = $region363
    $region362: #{custom-call.2} parent=1 // pred_region
      _
    $region363: #{custom-call.2} parent=1 // pred_fallthru
      _

// kernel: gsr_layer_batched.1
$region0: #{gsr_layer_batched.1}
  #allocation0 [shape = 'u32[]', space=smem, size = 0x4, offset = 0x4, fixed_abs, tag = 'smem constant byte address 0x4 - core index']
  #allocation1 [shape = 'u32[144,128]{1,0:T(1,128)}', space=vmem, size = 0x12000, scoped, tag = 'internal scratch']
  %s0 = inlined_call_operand.vmem [shape: f32[128,128], index: 0, kind: input, shape index: {}]
  %s1 = inlined_call_operand.vmem [shape: f32[128,128], index: 1, kind: input, shape index: {}]
  %s2 = inlined_call_operand.vmem [shape: f32[1,128,128], index: 2, kind: input, shape index: {}]
  %s3 = inlined_call_operand.vmem [shape: f32[1,128,128], index: 3, kind: input, shape index: {}]
  %s4 = inlined_call_operand.vmem [shape: f32[1,128,128], index: 4, kind: output, shape index: {0}]
  %s5 = inlined_call_operand.vmem [shape: f32[1,128,128], index: 5, kind: output, shape index: {1}]
  %6 = xla_tuple %s4, %s5
  %s7 = sld [smem:[#allocation0]]
  $region34: #{gsr_layer_batched.1} parent=0
    _
  %s9 = ssub.s32 1, %s7
  %s10 = scalar_select 0, %s9, %s7
  // Predicated region
  $region2: #{gsr_layer_batched.1} parent=0 // pred_check
    _
  $region3: #{gsr_layer_batched.1} parent=0 // pred_check_branch
    %12 = sbr.rel (0) target = $region5
  $region4: #{gsr_layer_batched.1} parent=0 // pred_region
    _
  $region5: #{gsr_layer_batched.1} parent=0 // pred_fallthru
    _
  // Predicated region
  $region6: #{gsr_layer_batched.1} parent=0 // pred_check
    _
  $region7: #{gsr_layer_batched.1} parent=0 // pred_check_branch
    %14 = sbr.rel (0) target = $region9
  $region8: #{gsr_layer_batched.1} parent=0 // pred_region
    _
  $region9: #{gsr_layer_batched.1} parent=0 // pred_fallthru
    _
  // Predicated region
  $region10: #{gsr_layer_batched.1} parent=0 // pred_check
    _
  $region11: #{gsr_layer_batched.1} parent=0 // pred_check_branch
    %16 = sbr.rel (0) target = $region13
  $region12: #{gsr_layer_batched.1} parent=0 // pred_region
    _
  $region13: #{gsr_layer_batched.1} parent=0 // pred_fallthru
    _
  // Predicated region
  $region14: #{gsr_layer_batched.1} parent=0 // pred_check
    _
  $region15: #{gsr_layer_batched.1} parent=0 // pred_check_branch
    %18 = sbr.rel (0) target = $region17
  $region16: #{gsr_layer_batched.1} parent=0 // pred_region
    _
  $region17: #{gsr_layer_batched.1} parent=0 // pred_fallthru
    _
  %v20 = vld [vmem:[%s0] sm:$0xff]
  %v21 = vld [vmem:[%s0 + $0x8] sm:$0xff]
  %v22 = vld [vmem:[%s0 + $0x10] sm:$0xff]
  %v23 = vld [vmem:[%s0 + $0x18] sm:$0xff]
  %v24 = vld [vmem:[%s0 + $0x20] sm:$0xff]
  %v25 = vld [vmem:[%s0 + $0x28] sm:$0xff]
  %v26 = vld [vmem:[%s0 + $0x30] sm:$0xff]
  %v27 = vld [vmem:[%s0 + $0x38] sm:$0xff]
  %v28 = vld [vmem:[%s0 + $0x40] sm:$0xff]
  %v29 = vld [vmem:[%s0 + $0x48] sm:$0xff]
  %v30 = vld [vmem:[%s0 + $0x50] sm:$0xff]
  %v31 = vld [vmem:[%s0 + $0x58] sm:$0xff]
  %v32 = vld [vmem:[%s0 + $0x60] sm:$0xff]
  %v33 = vld [vmem:[%s0 + $0x68] sm:$0xff]
  %v34 = vld [vmem:[%s0 + $0x70] sm:$0xff]
  %v35 = vld [vmem:[%s0 + $0x78] sm:$0xff]
  %v36 = vld [vmem:[%s1] sm:$0xff]
  %v37 = vld [vmem:[%s1 + $0x8] sm:$0xff]
  %v38 = vld [vmem:[%s1 + $0x10] sm:$0xff]
  %v39 = vld [vmem:[%s1 + $0x18] sm:$0xff]
  %v40 = vld [vmem:[%s1 + $0x20] sm:$0xff]
  %v41 = vld [vmem:[%s1 + $0x28] sm:$0xff]
  %v42 = vld [vmem:[%s1 + $0x30] sm:$0xff]
  %v43 = vld [vmem:[%s1 + $0x38] sm:$0xff]
  %v44 = vld [vmem:[%s1 + $0x40] sm:$0xff]
  %v45 = vld [vmem:[%s1 + $0x48] sm:$0xff]
  %v46 = vld [vmem:[%s1 + $0x50] sm:$0xff]
  %v47 = vld [vmem:[%s1 + $0x58] sm:$0xff]
  %v48 = vld [vmem:[%s1 + $0x60] sm:$0xff]
  %v49 = vld [vmem:[%s1 + $0x68] sm:$0xff]
  %v50 = vld [vmem:[%s1 + $0x70] sm:$0xff]
  %v51 = vld [vmem:[%s1 + $0x78] sm:$0xff]
  %v52 = vadd.f32 %v20, %v36
  %v53 = vadd.f32 %v21, %v37
  %v54 = vadd.f32 %v22, %v38
  %v55 = vadd.f32 %v23, %v39
  %v56 = vadd.f32 %v24, %v40
  %v57 = vadd.f32 %v25, %v41
  %v58 = vadd.f32 %v26, %v42
  %v59 = vadd.f32 %v27, %v43
  %v60 = vadd.f32 %v28, %v44
  %v61 = vadd.f32 %v29, %v45
  %v62 = vadd.f32 %v30, %v46
  %v63 = vadd.f32 %v31, %v47
  %v64 = vadd.f32 %v32, %v48
  %v65 = vadd.f32 %v33, %v49
  %v66 = vadd.f32 %v34, %v50
  %v67 = vadd.f32 %v35, %v51
  %v68 = vld [vmem:[%s2] sm:$0xff]
  %v69 = vld [vmem:[%s2 + $0x8] sm:$0xff]
  %v70 = vld [vmem:[%s2 + $0x10] sm:$0xff]
  %v71 = vld [vmem:[%s2 + $0x18] sm:$0xff]
  %v72 = vld [vmem:[%s2 + $0x20] sm:$0xff]
  %v73 = vld [vmem:[%s2 + $0x28] sm:$0xff]
  %v74 = vld [vmem:[%s2 + $0x30] sm:$0xff]
  %v75 = vld [vmem:[%s2 + $0x38] sm:$0xff]
  %v76 = vld [vmem:[%s2 + $0x40] sm:$0xff]
  %v77 = vld [vmem:[%s2 + $0x48] sm:$0xff]
  %v78 = vld [vmem:[%s2 + $0x50] sm:$0xff]
  %v79 = vld [vmem:[%s2 + $0x58] sm:$0xff]
  %v80 = vld [vmem:[%s2 + $0x60] sm:$0xff]
  %v81 = vld [vmem:[%s2 + $0x68] sm:$0xff]
  %v82 = vld [vmem:[%s2 + $0x70] sm:$0xff]
  %v83 = vld [vmem:[%s2 + $0x78] sm:$0xff]
  %v84 = vand.u32 2147483647, %v68
  %v85 = vand.u32 2147483647, %v69
  %v86 = vand.u32 2147483647, %v70
  %v87 = vand.u32 2147483647, %v71
  %v88 = vand.u32 2147483647, %v72
  %v89 = vand.u32 2147483647, %v73
  %v90 = vand.u32 2147483647, %v74
  %v91 = vand.u32 2147483647, %v75
  %v92 = vand.u32 2147483647, %v76
  %v93 = vand.u32 2147483647, %v77
  %v94 = vand.u32 2147483647, %v78
  %v95 = vand.u32 2147483647, %v79
  %v96 = vand.u32 2147483647, %v80
  %v97 = vand.u32 2147483647, %v81
  %v98 = vand.u32 2147483647, %v82
  %v99 = vand.u32 2147483647, %v83
  %v100 = vld [vmem:[%s3] sm:$0xff]
  %v101 = vld [vmem:[%s3 + $0x8] sm:$0xff]
  %v102 = vld [vmem:[%s3 + $0x10] sm:$0xff]
  %v103 = vld [vmem:[%s3 + $0x18] sm:$0xff]
  %v104 = vld [vmem:[%s3 + $0x20] sm:$0xff]
  %v105 = vld [vmem:[%s3 + $0x28] sm:$0xff]
  %v106 = vld [vmem:[%s3 + $0x30] sm:$0xff]
  %v107 = vld [vmem:[%s3 + $0x38] sm:$0xff]
  %v108 = vld [vmem:[%s3 + $0x40] sm:$0xff]
  %v109 = vld [vmem:[%s3 + $0x48] sm:$0xff]
  %v110 = vld [vmem:[%s3 + $0x50] sm:$0xff]
  %v111 = vld [vmem:[%s3 + $0x58] sm:$0xff]
  %v112 = vld [vmem:[%s3 + $0x60] sm:$0xff]
  %v113 = vld [vmem:[%s3 + $0x68] sm:$0xff]
  %v114 = vld [vmem:[%s3 + $0x70] sm:$0xff]
  %v115 = vld [vmem:[%s3 + $0x78] sm:$0xff]
  %116 = vmatprep.subr.mxu0 0.0
  %117 = vmatpush1.xpose.msra.mxu0 %v52
  %118 = vmatprep.subr.mxu0 0.0
  %119 = vmatpush1.xpose.msra.mxu0 %v53
  %120 = vmatprep.subr.mxu0 0.0
  %121 = vmatpush1.xpose.msra.mxu0 %v54
  %122 = vmatprep.subr.mxu0 0.0
  %123 = vmatpush1.xpose.msra.mxu0 %v55
  %124 = vmatprep.subr.mxu0 0.0
  %125 = vmatpush1.xpose.msra.mxu0 %v56
  %126 = vmatprep.subr.mxu0 0.0
  %127 = vmatpush1.xpose.msra.mxu0 %v57
  %128 = vmatprep.subr.mxu0 0.0
  %129 = vmatpush1.xpose.msra.mxu0 %v58
  %130 = vmatprep.subr.mxu0 0.0
  %131 = vmatpush1.xpose.msra.mxu0 %v59
  %132 = vmatprep.subr.mxu0 0.0
  %133 = vmatpush1.xpose.msra.mxu0 %v60
  %134 = vmatprep.subr.mxu0 0.0
  %135 = vmatpush1.xpose.msra.mxu0 %v61
  %136 = vmatprep.subr.mxu0 0.0
  %137 = vmatpush1.xpose.msra.mxu0 %v62
  %138 = vmatprep.subr.mxu0 0.0
  %139 = vmatpush1.xpose.msra.mxu0 %v63
  %140 = vmatprep.subr.mxu0 0.0
  %141 = vmatpush1.xpose.msra.mxu0 %v64
  %142 = vmatprep.subr.mxu0 0.0
  %143 = vmatpush1.xpose.msra.mxu0 %v65
  %144 = vmatprep.subr.mxu0 0.0
  %145 = vmatpush1.xpose.msra.mxu0 %v66
  %146 = vmatprep.subr.mxu0 0.0
  %147 = vmatpush1.xpose.msra.mxu0 %v67
  %148 = vmatprep.subr.mxu0 0.0
  %149 = vmatpush1.xpose.msra.mxu0 0.0
  %150 = vmatprep.subr.mxu0 0.0
  %151 = vmatpush1.xpose.msra.mxu0 0.0
  %152 = vmatprep.subr.mxu0 0.0
  %153 = vmatpush1.xpose.msra.mxu0 0.0
  %154 = vmatprep.subr.mxu0 0.0
  %155 = vmatpush1.xpose.msra.mxu0 0.0
  %156 = vmatprep.subr.mxu0 0.0
  %157 = vmatpush1.xpose.msra.mxu0 0.0
  %158 = vmatprep.subr.mxu0 0.0
  %159 = vmatpush1.xpose.msra.mxu0 0.0
  %160 = vmatprep.subr.mxu0 0.0
  %161 = vmatpush1.xpose.msra.mxu0 0.0
  %162 = vmatprep.subr.mxu0 0.0
  %163 = vmatpush1.xpose.msra.mxu0 0.0
  %164 = vmatprep.subr.mxu0 0.0
  %165 = vmatpush1.xpose.msra.mxu0 0.0
  %166 = vmatprep.subr.mxu0 0.0
  %167 = vmatpush1.xpose.msra.mxu0 0.0
  %168 = vmatprep.subr.mxu0 0.0
  %169 = vmatpush1.xpose.msra.mxu0 0.0
  %170 = vmatprep.subr.mxu0 0.0
  %171 = vmatpush1.xpose.msra.mxu0 0.0
  %172 = vmatprep.subr.mxu0 0.0
  %173 = vmatpush1.xpose.msra.mxu0 0.0
  %174 = vmatprep.subr.mxu0 0.0
  %175 = vmatpush1.xpose.msra.mxu0 0.0
  %176 = vmatprep.subr.mxu0 0.0
  %177 = vmatpush1.xpose.msra.mxu0 0.0
  %178 = vmatprep.subr.mxu0 0.0
  %179 = vmatpush1.xpose.msra.mxu0 0.0
  %180 = vmatprep.mubr.f32.mxu0 0.0
  %181 = vmatmul.mubr.f32.gmra.mrb[0].mxu0 %v84
  %v182 = vpop.f32.mrb[0].mxu0
  %v183 = vadd.f32 0.0, %v182
  %v184 = vpop.f32.mrb[0].mxu0
  %185 = vmatprep.mubr.f32.mxu0 0.0
  %186 = vmatmul.mubr.f32.gmra.mrb[0].mxu0 %v85
  %v187 = vpop.f32.mrb[0].mxu0
  %v188 = vadd.f32 0.0, %v187
  %v189 = vpop.f32.mrb[0].mxu0
  %190 = vmatprep.mubr.f32.mxu0 0.0
  %191 = vmatmul.mubr.f32.gmra.mrb[0].mxu0 %v86
  %v192 = vpop.f32.mrb[0].mxu0
  %v193 = vadd.f32 0.0, %v192
  %v194 = vpop.f32.mrb[0].mxu0
  %195 = vmatprep.mubr.f32.mxu0 0.0
  %196 = vmatmul.mubr.f32.gmra.mrb[0].mxu0 %v87
  %v197 = vpop.f32.mrb[0].mxu0
  %v198 = vadd.f32 0.0, %v197
  %v199 = vpop.f32.mrb[0].mxu0
  %200 = vmatprep.mubr.f32.mxu0 0.0
  %201 = vmatmul.mubr.f32.gmra.mrb[0].mxu0 %v88
  %v202 = vpop.f32.mrb[0].mxu0
  %v203 = vadd.f32 0.0, %v202
  %v204 = vpop.f32.mrb[0].mxu0
  %205 = vmatprep.mubr.f32.mxu0 0.0
  %206 = vmatmul.mubr.f32.gmra.mrb[0].mxu0 %v89
  %v207 = vpop.f32.mrb[0].mxu0
  %v208 = vadd.f32 0.0, %v207
  %v209 = vpop.f32.mrb[0].mxu0
  %210 = vmatprep.mubr.f32.mxu0 0.0
  %211 = vmatmul.mubr.f32.gmra.mrb[0].mxu0 %v90
  %v212 = vpop.f32.mrb[0].mxu0
  %v213 = vadd.f32 0.0, %v212
  %v214 = vpop.f32.mrb[0].mxu0
  %215 = vmatprep.mubr.f32.mxu0 0.0
  %216 = vmatmul.mubr.f32.gmra.mrb[0].mxu0 %v91
  %v217 = vpop.f32.mrb[0].mxu0
  %v218 = vadd.f32 0.0, %v217
  %v219 = vpop.f32.mrb[0].mxu0
  %220 = vmatprep.mubr.f32.mxu0 0.0
  %221 = vmatmul.mubr.f32.gmra.mrb[0].mxu0 %v92
  %v222 = vpop.f32.mrb[0].mxu0
  %v223 = vadd.f32 0.0, %v222
  %v224 = vpop.f32.mrb[0].mxu0
  %225 = vmatprep.mubr.f32.mxu0 0.0
  %226 = vmatmul.mubr.f32.gmra.mrb[0].mxu0 %v93
  %v227 = vpop.f32.mrb[0].mxu0
  %v228 = vadd.f32 0.0, %v227
  %v229 = vpop.f32.mrb[0].mxu0
  %230 = vmatprep.mubr.f32.mxu0 0.0
  %231 = vmatmul.mubr.f32.gmra.mrb[0].mxu0 %v94
  %v232 = vpop.f32.mrb[0].mxu0
  %v233 = vadd.f32 0.0, %v232
  %v234 = vpop.f32.mrb[0].mxu0
  %235 = vmatprep.mubr.f32.mxu0 0.0
  %236 = vmatmul.mubr.f32.gmra.mrb[0].mxu0 %v95
  %v237 = vpop.f32.mrb[0].mxu0
  %v238 = vadd.f32 0.0, %v237
  %v239 = vpop.f32.mrb[0].mxu0
  %240 = vmatprep.mubr.f32.mxu0 0.0
  %241 = vmatmul.mubr.f32.gmra.mrb[0].mxu0 %v96
  %v242 = vpop.f32.mrb[0].mxu0
  %v243 = vadd.f32 0.0, %v242
  %v244 = vpop.f32.mrb[0].mxu0
  %245 = vmatprep.mubr.f32.mxu0 0.0
  %246 = vmatmul.mubr.f32.gmra.mrb[0].mxu0 %v97
  %v247 = vpop.f32.mrb[0].mxu0
  %v248 = vadd.f32 0.0, %v247
  %v249 = vpop.f32.mrb[0].mxu0
  %250 = vmatprep.mubr.f32.mxu0 0.0
  %251 = vmatmul.mubr.f32.gmra.mrb[0].mxu0 %v98
  %v252 = vpop.f32.mrb[0].mxu0
  %v253 = vadd.f32 0.0, %v252
  %v254 = vpop.f32.mrb[0].mxu0
  %255 = vmatprep.mubr.f32.mxu0 0.0
  %256 = vmatmul.mubr.f32.gmra.mrb[0].mxu0 %v99
  %v257 = vpop.f32.mrb[0].mxu0
  %v258 = vadd.f32 0.0, %v257
  %v259 = vpop.f32.mrb[0].mxu0
  %260 = vdwg.mxu0
  %v261 = vpack.c.bf16 %v101, %v100
  %v262 = vpack.c.bf16 %v103, %v102
  %v263 = vpack.c.bf16 %v105, %v104
  %v264 = vpack.c.bf16 %v107, %v106
  %v265 = vpack.c.bf16 %v109, %v108
  %v266 = vpack.c.bf16 %v111, %v110
  %v267 = vpack.c.bf16 %v113, %v112
  %v268 = vpack.c.bf16 %v115, %v114
  %v269 = vpack.c.bf16 %v188, %v183
  %v270 = vpack.c.bf16 %v198, %v193
  %v271 = vpack.c.bf16 %v208, %v203
  %v272 = vpack.c.bf16 %v218, %v213
  %v273 = vpack.c.bf16 %v228, %v223
  %v274 = vpack.c.bf16 %v238, %v233
  %v275 = vpack.c.bf16 %v248, %v243
  %v276 = vpack.c.bf16 %v258, %v253
  %277 = vmatprep.subr.bf16.mxu0 0
  %278 = vmatpush1.bf16.msra.mxu0 %v269
  %279 = vmatprep.subr.bf16.mxu0 0
  %280 = vmatpush1.bf16.msra.mxu0 %v270
  %281 = vmatprep.subr.bf16.mxu0 0
  %282 = vmatpush1.bf16.msra.mxu0 %v271
  %283 = vmatprep.subr.bf16.mxu0 0
  %284 = vmatpush1.bf16.msra.mxu0 %v272
  %285 = vmatprep.subr.bf16.mxu0 0
  %286 = vmatpush1.bf16.msra.mxu0 %v273
  %287 = vmatprep.subr.bf16.mxu0 0
  %288 = vmatpush1.bf16.msra.mxu0 %v274
  %289 = vmatprep.subr.bf16.mxu0 0
  %290 = vmatpush1.bf16.msra.mxu0 %v275
  %291 = vmatprep.subr.bf16.mxu0 0
  %292 = vmatpush1.bf16.msra.mxu0 %v276
  %293 = vmatprep.subr.bf16.mxu0 0
  %294 = vmatpush1.bf16.msra.mxu0 0
  %295 = vmatprep.subr.bf16.mxu0 0
  %296 = vmatpush1.bf16.msra.mxu0 0
  %297 = vmatprep.subr.bf16.mxu0 0
  %298 = vmatpush1.bf16.msra.mxu0 0
  %299 = vmatprep.subr.bf16.mxu0 0
  %300 = vmatpush1.bf16.msra.mxu0 0
  %301 = vmatprep.subr.bf16.mxu0 0
  %302 = vmatpush1.bf16.msra.mxu0 0
  %303 = vmatprep.subr.bf16.mxu0 0
  %304 = vmatpush1.bf16.msra.mxu0 0
  %305 = vmatprep.subr.bf16.mxu0 0
  %306 = vmatpush1.bf16.msra.mxu0 0
  %307 = vmatprep.subr.bf16.mxu0 0
  %308 = vmatpush1.bf16.msra.mxu0 0
  %309 = vmatprep.mubr.bf16.mxu0 0
  %310 = vmatmul.mubr.bf16.gmra.mrb[0].mxu0 %v261
  %v311 = vpop.f32.mrb[0].mxu0
  %v312 = vadd.f32 0.0, %v311
  %v313 = vpop.f32.mrb[0].mxu0
  %v314 = vpop.f32.mrb[0].mxu0
  %v315 = vadd.f32 0.0, %v314
  %v316 = vpop.f32.mrb[0].mxu0
  %317 = vmatprep.mubr.bf16.mxu0 0
  %318 = vmatmul.mubr.bf16.gmra.mrb[0].mxu0 %v262
  %v319 = vpop.f32.mrb[0].mxu0
  %v320 = vadd.f32 0.0, %v319
  %v321 = vpop.f32.mrb[0].mxu0
  %v322 = vpop.f32.mrb[0].mxu0
  %v323 = vadd.f32 0.0, %v322
  %v324 = vpop.f32.mrb[0].mxu0
  %325 = vmatprep.mubr.bf16.mxu0 0
  %326 = vmatmul.mubr.bf16.gmra.mrb[0].mxu0 %v263
  %v327 = vpop.f32.mrb[0].mxu0
  %v328 = vadd.f32 0.0, %v327
  %v329 = vpop.f32.mrb[0].mxu0
  %v330 = vpop.f32.mrb[0].mxu0
  %v331 = vadd.f32 0.0, %v330
  %v332 = vpop.f32.mrb[0].mxu0
  %333 = vmatprep.mubr.bf16.mxu0 0
  %334 = vmatmul.mubr.bf16.gmra.mrb[0].mxu0 %v264
  %v335 = vpop.f32.mrb[0].mxu0
  %v336 = vadd.f32 0.0, %v335
  %v337 = vpop.f32.mrb[0].mxu0
  %v338 = vpop.f32.mrb[0].mxu0
  %v339 = vadd.f32 0.0, %v338
  %v340 = vpop.f32.mrb[0].mxu0
  %341 = vmatprep.mubr.bf16.mxu0 0
  %342 = vmatmul.mubr.bf16.gmra.mrb[0].mxu0 %v265
  %v343 = vpop.f32.mrb[0].mxu0
  %v344 = vadd.f32 0.0, %v343
  %v345 = vpop.f32.mrb[0].mxu0
  %v346 = vpop.f32.mrb[0].mxu0
  %v347 = vadd.f32 0.0, %v346
  %v348 = vpop.f32.mrb[0].mxu0
  %349 = vmatprep.mubr.bf16.mxu0 0
  %350 = vmatmul.mubr.bf16.gmra.mrb[0].mxu0 %v266
  %v351 = vpop.f32.mrb[0].mxu0
  %v352 = vadd.f32 0.0, %v351
  %v353 = vpop.f32.mrb[0].mxu0
  %v354 = vpop.f32.mrb[0].mxu0
  %v355 = vadd.f32 0.0, %v354
  %v356 = vpop.f32.mrb[0].mxu0
  %357 = vmatprep.mubr.bf16.mxu0 0
  %358 = vmatmul.mubr.bf16.gmra.mrb[0].mxu0 %v267
  %v359 = vpop.f32.mrb[0].mxu0
  %v360 = vadd.f32 0.0, %v359
  %v361 = vpop.f32.mrb[0].mxu0
  %v362 = vpop.f32.mrb[0].mxu0
  %v363 = vadd.f32 0.0, %v362
  %v364 = vpop.f32.mrb[0].mxu0
  %365 = vmatprep.mubr.bf16.mxu0 0
  %366 = vmatmul.mubr.bf16.gmra.mrb[0].mxu0 %v268
  %v367 = vpop.f32.mrb[0].mxu0
  %v368 = vadd.f32 0.0, %v367
  %v369 = vpop.f32.mrb[0].mxu0
  %v370 = vpop.f32.mrb[0].mxu0
  %v371 = vadd.f32 0.0, %v370
  %v372 = vpop.f32.mrb[0].mxu0
  %373 = vdwg.mxu0
  %v374 = vand.u32 2147483647, %v312
  %v375 = vand.u32 2147483647, %v315
  %v376 = vand.u32 2147483647, %v320
  %v377 = vand.u32 2147483647, %v323
  %v378 = vand.u32 2147483647, %v328
  %v379 = vand.u32 2147483647, %v331
  %v380 = vand.u32 2147483647, %v336
  %v381 = vand.u32 2147483647, %v339
  %v382 = vand.u32 2147483647, %v344
  %v383 = vand.u32 2147483647, %v347
  %v384 = vand.u32 2147483647, %v352
  %v385 = vand.u32 2147483647, %v355
  %v386 = vand.u32 2147483647, %v360
  %v387 = vand.u32 2147483647, %v363
  %v388 = vand.u32 2147483647, %v368
  %v389 = vand.u32 2147483647, %v371
  %v390 = vlaneseq
  %v391 = vshrl.u32 %v390, 7
  %v392 = vadd.s32 %v391, 8
  %v393 = vadd.s32 %v391, 16
  %v394 = vadd.s32 %v391, 24
  %v395 = vadd.s32 %v391, 32
  %v396 = vadd.s32 %v391, 40
  %v397 = vadd.s32 %v391, 48
  %v398 = vadd.s32 %v391, 56
  %v399 = vadd.s32 %v391, 64
  %v400 = vadd.s32 %v391, 72
  %v401 = vadd.s32 %v391, 80
  %v402 = vadd.s32 %v391, 88
  %v403 = vadd.s32 %v391, 96
  %v404 = vadd.s32 %v391, 104
  %v405 = vadd.s32 %v391, 112
  %v406 = vadd.s32 %v391, 120
  %v407 = vlaneseq
  %v408 = vand.u32 %v407, 127
  %vm409 = vcmp.eq.s32.totalorder %v391, %v408
  %vm410 = vcmp.eq.s32.totalorder %v392, %v408
  %vm411 = vcmp.eq.s32.totalorder %v393, %v408
  %vm412 = vcmp.eq.s32.totalorder %v394, %v408
  %vm413 = vcmp.eq.s32.totalorder %v395, %v408
  %vm414 = vcmp.eq.s32.totalorder %v396, %v408
  %vm415 = vcmp.eq.s32.totalorder %v397, %v408
  %vm416 = vcmp.eq.s32.totalorder %v398, %v408
  %vm417 = vcmp.eq.s32.totalorder %v399, %v408
  %vm418 = vcmp.eq.s32.totalorder %v400, %v408
  %vm419 = vcmp.eq.s32.totalorder %v401, %v408
  %vm420 = vcmp.eq.s32.totalorder %v402, %v408
  %vm421 = vcmp.eq.s32.totalorder %v403, %v408
  %vm422 = vcmp.eq.s32.totalorder %v404, %v408
  %vm423 = vcmp.eq.s32.totalorder %v405, %v408
  %vm424 = vcmp.eq.s32.totalorder %v406, %v408
  %v425 = vsel %vm409, 1.0, %v374
  %v426 = vsel %vm410, 1.0, %v375
  %v427 = vsel %vm411, 1.0, %v376
  %v428 = vsel %vm412, 1.0, %v377
  %v429 = vsel %vm413, 1.0, %v378
  %v430 = vsel %vm414, 1.0, %v379
  %v431 = vsel %vm415, 1.0, %v380
  %v432 = vsel %vm416, 1.0, %v381
  %v433 = vsel %vm417, 1.0, %v382
  %v434 = vsel %vm418, 1.0, %v383
  %v435 = vsel %vm419, 1.0, %v384
  %v436 = vsel %vm420, 1.0, %v385
  %v437 = vsel %vm421, 1.0, %v386
  %v438 = vsel %vm422, 1.0, %v387
  %v439 = vsel %vm423, 1.0, %v388
  %v440 = vsel %vm424, 1.0, %v389
  %v441 = vadd.f32 %v425, %v426
  %v442 = vadd.f32 %v441, %v427
  %v443 = vadd.f32 %v442, %v428
  %v444 = vadd.f32 %v443, %v429
  %v445 = vadd.f32 %v444, %v430
  %v446 = vadd.f32 %v445, %v431
  %v447 = vadd.f32 %v446, %v432
  %v448 = vadd.f32 %v447, %v433
  %v449 = vadd.f32 %v448, %v434
  %v450 = vadd.f32 %v449, %v435
  %v451 = vadd.f32 %v450, %v436
  %v452 = vadd.f32 %v451, %v437
  %v453 = vadd.f32 %v452, %v438
  %v454 = vadd.f32 %v453, %v439
  %v455 = vadd.f32 %v454, %v440
  %v456 = vrot.slane %v455, 4
  %v457 = vadd.f32 %v455, %v456
  %v458 = vrot.slane %v457, 2
  %v459 = vadd.f32 %v457, %v458
  %v460 = vrot.slane %v459, 1
  %v461 = vadd.f32 %v459, %v460
  %v462 = vrsqrt.pop %v461
  %v463 = vsel %vm409, %v462, 0.0
  %v464 = vsel %vm410, %v462, 0.0
  %v465 = vsel %vm411, %v462, 0.0
  %v466 = vsel %vm412, %v462, 0.0
  %v467 = vsel %vm413, %v462, 0.0
  %v468 = vsel %vm414, %v462, 0.0
  %v469 = vsel %vm415, %v462, 0.0
  %v470 = vsel %vm416, %v462, 0.0
  %v471 = vsel %vm417, %v462, 0.0
  %v472 = vsel %vm418, %v462, 0.0
  %v473 = vsel %vm419, %v462, 0.0
  %v474 = vsel %vm420, %v462, 0.0
  %v475 = vsel %vm421, %v462, 0.0
  %v476 = vsel %vm422, %v462, 0.0
  %v477 = vsel %vm423, %v462, 0.0
  %v478 = vsel %vm424, %v462, 0.0
  %479 = vadd.xlane.f32.xlu0 %v463
  %v480 = vpop.xlane.xlu0 %479
  %481 = vadd.xlane.f32.xlu0 %v464
  %v482 = vpop.xlane.xlu0 %481
  %483 = vadd.xlane.f32.xlu0 %v465
  %v484 = vpop.xlane.xlu0 %483
  %485 = vadd.xlane.f32.xlu0 %v466
  %v486 = vpop.xlane.xlu0 %485
  %487 = vadd.xlane.f32.xlu0 %v467
  %v488 = vpop.xlane.xlu0 %487
  %489 = vadd.xlane.f32.xlu0 %v468
  %v490 = vpop.xlane.xlu0 %489
  %491 = vadd.xlane.f32.xlu0 %v469
  %v492 = vpop.xlane.xlu0 %491
  %493 = vadd.xlane.f32.xlu0 %v470
  %v494 = vpop.xlane.xlu0 %493
  %495 = vadd.xlane.f32.xlu0 %v471
  %v496 = vpop.xlane.xlu0 %495
  %497 = vadd.xlane.f32.xlu0 %v472
  %v498 = vpop.xlane.xlu0 %497
  %499 = vadd.xlane.f32.xlu0 %v473
  %v500 = vpop.xlane.xlu0 %499
  %501 = vadd.xlane.f32.xlu0 %v474
  %v502 = vpop.xlane.xlu0 %501
  %503 = vadd.xlane.f32.xlu0 %v475
  %v504 = vpop.xlane.xlu0 %503
  %505 = vadd.xlane.f32.xlu0 %v476
  %v506 = vpop.xlane.xlu0 %505
  %507 = vadd.xlane.f32.xlu0 %v477
  %v508 = vpop.xlane.xlu0 %507
  %509 = vadd.xlane.f32.xlu0 %v478
  %v510 = vpop.xlane.xlu0 %509
  %v511 = vmul.f32 %v480, %v425
  %v512 = vmul.f32 %v482, %v426
  %v513 = vmul.f32 %v484, %v427
  %v514 = vmul.f32 %v486, %v428
  %v515 = vmul.f32 %v488, %v429
  %v516 = vmul.f32 %v490, %v430
  %v517 = vmul.f32 %v492, %v431
  %v518 = vmul.f32 %v494, %v432
  %v519 = vmul.f32 %v496, %v433
  %v520 = vmul.f32 %v498, %v434
  %v521 = vmul.f32 %v500, %v435
  %v522 = vmul.f32 %v502, %v436
  %v523 = vmul.f32 %v504, %v437
  %v524 = vmul.f32 %v506, %v438
  %v525 = vmul.f32 %v508, %v439
  %v526 = vmul.f32 %v510, %v440
  %v527 = vmul.f32 %v511, %v462
  %v528 = vmul.f32 %v512, %v462
  %v529 = vmul.f32 %v513, %v462
  %v530 = vmul.f32 %v514, %v462
  %v531 = vmul.f32 %v515, %v462
  %v532 = vmul.f32 %v516, %v462
  %v533 = vmul.f32 %v517, %v462
  %v534 = vmul.f32 %v518, %v462
  %v535 = vmul.f32 %v519, %v462
  %v536 = vmul.f32 %v520, %v462
  %v537 = vmul.f32 %v521, %v462
  %v538 = vmul.f32 %v522, %v462
  %v539 = vmul.f32 %v523, %v462
  %v540 = vmul.f32 %v524, %v462
  %v541 = vmul.f32 %v525, %v462
  %v542 = vmul.f32 %v526, %v462
  %543 = vst [vmem:[%s4] sm:$0xff] %v527
  %544 = vst [vmem:[%s4 + $0x8] sm:$0xff] %v528
  %545 = vst [vmem:[%s4 + $0x10] sm:$0xff] %v529
  %546 = vst [vmem:[%s4 + $0x18] sm:$0xff] %v530
  %547 = vst [vmem:[%s4 + $0x20] sm:$0xff] %v531
  %548 = vst [vmem:[%s4 + $0x28] sm:$0xff] %v532
  %549 = vst [vmem:[%s4 + $0x30] sm:$0xff] %v533
  %550 = vst [vmem:[%s4 + $0x38] sm:$0xff] %v534
  %551 = vst [vmem:[%s4 + $0x40] sm:$0xff] %v535
  %552 = vst [vmem:[%s4 + $0x48] sm:$0xff] %v536
  %553 = vst [vmem:[%s4 + $0x50] sm:$0xff] %v537
  %554 = vst [vmem:[%s4 + $0x58] sm:$0xff] %v538
  %555 = vst [vmem:[%s4 + $0x60] sm:$0xff] %v539
  %556 = vst [vmem:[%s4 + $0x68] sm:$0xff] %v540
  %557 = vst [vmem:[%s4 + $0x70] sm:$0xff] %v541
  %558 = vst [vmem:[%s4 + $0x78] sm:$0xff] %v542
  %v559 = vpack.c.bf16 %v528, %v527
  %v560 = vpack.c.bf16 %v530, %v529
  %v561 = vpack.c.bf16 %v532, %v531
  %v562 = vpack.c.bf16 %v534, %v533
  %v563 = vpack.c.bf16 %v536, %v535
  %v564 = vpack.c.bf16 %v538, %v537
  %v565 = vpack.c.bf16 %v540, %v539
  %v566 = vpack.c.bf16 %v542, %v541
  %567 = vmatprep.subr.bf16.mxu0 0
  %568 = vmatpush1.bf16.xpose.msra.mxu0 %v559
  %569 = vmatprep.subr.bf16.mxu0 0
  %570 = vmatpush1.bf16.xpose.msra.mxu0 %v560
  %571 = vmatprep.subr.bf16.mxu0 0
  %572 = vmatpush1.bf16.xpose.msra.mxu0 %v561
  %573 = vmatprep.subr.bf16.mxu0 0
  %574 = vmatpush1.bf16.xpose.msra.mxu0 %v562
  %575 = vmatprep.subr.bf16.mxu0 0
  %576 = vmatpush1.bf16.xpose.msra.mxu0 %v563
  %577 = vmatprep.subr.bf16.mxu0 0
  %578 = vmatpush1.bf16.xpose.msra.mxu0 %v564
  %579 = vmatprep.subr.bf16.mxu0 0
  %580 = vmatpush1.bf16.xpose.msra.mxu0 %v565
  %581 = vmatprep.subr.bf16.mxu0 0
  %582 = vmatpush1.bf16.xpose.msra.mxu0 %v566
  %583 = vmatprep.subr.bf16.mxu0 0
  %584 = vmatpush1.bf16.xpose.msra.mxu0 0
  %585 = vmatprep.subr.bf16.mxu0 0
  %586 = vmatpush1.bf16.xpose.msra.mxu0 0
  %587 = vmatprep.subr.bf16.mxu0 0
  %588 = vmatpush1.bf16.xpose.msra.mxu0 0
  %589 = vmatprep.subr.bf16.mxu0 0
  %590 = vmatpush1.bf16.xpose.msra.mxu0 0
  %591 = vmatprep.subr.bf16.mxu0 0
  %592 = vmatpush1.bf16.xpose.msra.mxu0 0
  %593 = vmatprep.subr.bf16.mxu0 0
  %594 = vmatpush1.bf16.xpose.msra.mxu0 0
  %595 = vmatprep.subr.bf16.mxu0 0
  %596 = vmatpush1.bf16.xpose.msra.mxu0 0
  %597 = vmatprep.subr.bf16.mxu0 0
  %598 = vmatpush1.bf16.xpose.msra.mxu0 0
  %599 = vmatprep.mubr.bf16.mxu0 0
  %600 = vmatmul.mubr.bf16.gmra.mrb[0].mxu0 %v559
  %v601 = vpop.f32.mrb[0].mxu0
  %v602 = vadd.f32 0.0, %v601
  %v603 = vpop.f32.mrb[0].mxu0
  %v604 = vpop.f32.mrb[0].mxu0
  %v605 = vadd.f32 0.0, %v604
  %v606 = vpop.f32.mrb[0].mxu0
  %607 = vmatprep.mubr.bf16.mxu0 0
  %608 = vmatmul.mubr.bf16.gmra.mrb[0].mxu0 %v560
  %v609 = vpop.f32.mrb[0].mxu0
  %v610 = vadd.f32 0.0, %v609
  %v611 = vpop.f32.mrb[0].mxu0
  %v612 = vpop.f32.mrb[0].mxu0
  %v613 = vadd.f32 0.0, %v612
  %v614 = vpop.f32.mrb[0].mxu0
  %615 = vmatprep.mubr.bf16.mxu0 0
  %616 = vmatmul.mubr.bf16.gmra.mrb[0].mxu0 %v561
  %v617 = vpop.f32.mrb[0].mxu0
  %v618 = vadd.f32 0.0, %v617
  %v619 = vpop.f32.mrb[0].mxu0
  %v620 = vpop.f32.mrb[0].mxu0
  %v621 = vadd.f32 0.0, %v620
  %v622 = vpop.f32.mrb[0].mxu0
  %623 = vmatprep.mubr.bf16.mxu0 0
  %624 = vmatmul.mubr.bf16.gmra.mrb[0].mxu0 %v562
  %v625 = vpop.f32.mrb[0].mxu0
  %v626 = vadd.f32 0.0, %v625
  %v627 = vpop.f32.mrb[0].mxu0
  %v628 = vpop.f32.mrb[0].mxu0
  %v629 = vadd.f32 0.0, %v628
  %v630 = vpop.f32.mrb[0].mxu0
  %631 = vmatprep.mubr.bf16.mxu0 0
  %632 = vmatmul.mubr.bf16.gmra.mrb[0].mxu0 %v563
  %v633 = vpop.f32.mrb[0].mxu0
  %v634 = vadd.f32 0.0, %v633
  %v635 = vpop.f32.mrb[0].mxu0
  %v636 = vpop.f32.mrb[0].mxu0
  %v637 = vadd.f32 0.0, %v636
  %v638 = vpop.f32.mrb[0].mxu0
  %639 = vmatprep.mubr.bf16.mxu0 0
  %640 = vmatmul.mubr.bf16.gmra.mrb[0].mxu0 %v564
  %v641 = vpop.f32.mrb[0].mxu0
  %v642 = vadd.f32 0.0, %v641
  %v643 = vpop.f32.mrb[0].mxu0
  %v644 = vpop.f32.mrb[0].mxu0
  %v645 = vadd.f32 0.0, %v644
  %v646 = vpop.f32.mrb[0].mxu0
  %647 = vmatprep.mubr.bf16.mxu0 0
  %648 = vmatmul.mubr.bf16.gmra.mrb[0].mxu0 %v565
  %v649 = vpop.f32.mrb[0].mxu0
  %v650 = vadd.f32 0.0, %v649
  %v651 = vpop.f32.mrb[0].mxu0
  %v652 = vpop.f32.mrb[0].mxu0
  %v653 = vadd.f32 0.0, %v652
  %v654 = vpop.f32.mrb[0].mxu0
  %655 = vmatprep.mubr.bf16.mxu0 0
  %656 = vmatmul.mubr.bf16.gmra.mrb[0].mxu0 %v566
  %v657 = vpop.f32.mrb[0].mxu0
  %v658 = vadd.f32 0.0, %v657
  %v659 = vpop.f32.mrb[0].mxu0
  %v660 = vpop.f32.mrb[0].mxu0
  %v661 = vadd.f32 0.0, %v660
  %v662 = vpop.f32.mrb[0].mxu0
  %663 = vdwg.mxu0
  %v664 = vsel %vm409, 1.0, %v602
  %v665 = vsel %vm410, 1.0, %v605
  %v666 = vsel %vm411, 1.0, %v610
  %v667 = vsel %vm412, 1.0, %v613
  %v668 = vsel %vm413, 1.0, %v618
  %v669 = vsel %vm414, 1.0, %v621
  %v670 = vsel %vm415, 1.0, %v626
  %v671 = vsel %vm416, 1.0, %v629
  %v672 = vsel %vm417, 1.0, %v634
  %v673 = vsel %vm418, 1.0, %v637
  %v674 = vsel %vm419, 1.0, %v642
  %v675 = vsel %vm420, 1.0, %v645
  %v676 = vsel %vm421, 1.0, %v650
  %v677 = vsel %vm422, 1.0, %v653
  %v678 = vsel %vm423, 1.0, %v658
  %v679 = vsel %vm424, 1.0, %v661
  %v680 = vand.u32 2147483647, %v664
  %v681 = vand.u32 2147483647, %v665
  %v682 = vand.u32 2147483647, %v666
  %v683 = vand.u32 2147483647, %v667
  %v684 = vand.u32 2147483647, %v668
  %v685 = vand.u32 2147483647, %v669
  %v686 = vand.u32 2147483647, %v670
  %v687 = vand.u32 2147483647, %v671
  %v688 = vand.u32 2147483647, %v672
  %v689 = vand.u32 2147483647, %v673
  %v690 = vand.u32 2147483647, %v674
  %v691 = vand.u32 2147483647, %v675
  %v692 = vand.u32 2147483647, %v676
  %v693 = vand.u32 2147483647, %v677
  %v694 = vand.u32 2147483647, %v678
  %v695 = vand.u32 2147483647, %v679
  %696 = vst [vmem:[%s5] sm:$0xff] %v680
  %697 = vst [vmem:[%s5 + $0x8] sm:$0xff] %v681
  %698 = vst [vmem:[%s5 + $0x10] sm:$0xff] %v682
  %699 = vst [vmem:[%s5 + $0x18] sm:$0xff] %v683
  %700 = vst [vmem:[%s5 + $0x20] sm:$0xff] %v684
  %701 = vst [vmem:[%s5 + $0x28] sm:$0xff] %v685
  %702 = vst [vmem:[%s5 + $0x30] sm:$0xff] %v686
  %703 = vst [vmem:[%s5 + $0x38] sm:$0xff] %v687
  %704 = vst [vmem:[%s5 + $0x40] sm:$0xff] %v688
  %705 = vst [vmem:[%s5 + $0x48] sm:$0xff] %v689
  %706 = vst [vmem:[%s5 + $0x50] sm:$0xff] %v690
  %707 = vst [vmem:[%s5 + $0x58] sm:$0xff] %v691
  %708 = vst [vmem:[%s5 + $0x60] sm:$0xff] %v692
  %709 = vst [vmem:[%s5 + $0x68] sm:$0xff] %v693
  %710 = vst [vmem:[%s5 + $0x70] sm:$0xff] %v694
  %711 = vst [vmem:[%s5 + $0x78] sm:$0xff] %v695
  // Predicated region
  $region18: #{gsr_layer_batched.1} parent=0 // pred_check
    _
  $region19: #{gsr_layer_batched.1} parent=0 // pred_check_branch
    %713 = sbr.rel (0) target = $region21
  $region20: #{gsr_layer_batched.1} parent=0 // pred_region
    _
  $region21: #{gsr_layer_batched.1} parent=0 // pred_fallthru
    _
  // Predicated region
  $region22: #{gsr_layer_batched.1} parent=0 // pred_check
    _
  $region23: #{gsr_layer_batched.1} parent=0 // pred_check_branch
    %715 = sbr.rel (0) target = $region25
  $region24: #{gsr_layer_batched.1} parent=0 // pred_region
    _
  $region25: #{gsr_layer_batched.1} parent=0 // pred_fallthru
    _
  // Predicated region
  $region26: #{gsr_layer_batched.1} parent=0 // pred_check
    _
  $region27: #{gsr_layer_batched.1} parent=0 // pred_check_branch
    %717 = sbr.rel (0) target = $region29
  $region28: #{gsr_layer_batched.1} parent=0 // pred_region
    _
  $region29: #{gsr_layer_batched.1} parent=0 // pred_fallthru
    _
  // Predicated region
  $region30: #{gsr_layer_batched.1} parent=0 // pred_check
    _
  $region31: #{gsr_layer_batched.1} parent=0 // pred_check_branch
    %719 = sbr.rel (0) target = $region33
  $region32: #{gsr_layer_batched.1} parent=0 // pred_region
    _
  $region33: #{gsr_layer_batched.1} parent=0 // pred_fallthru
    _

</llo_original>
